<compile_context>
chip_gen: v7x
topology: tpu7x:2x2x1
jax: 0.10.0
libtpu: 0.0.40
codegen_flags: <defaults>
</compile_context>

<pallas_src>
import numpy as np
import jax
import jax.numpy as jnp
from jax.experimental import pallas as pl
from jax.experimental.pallas import tpu as pltpu

CUTOFF = 5.0
GAMMA = 10.0
RBF_STEP = 0.1
N_RBF = 300          # torch.arange(0, 30, 0.1) -> 300 centers
RBF_PAD = 384        # padded to a multiple of 128 lanes (zero-padded weights)
HIDDEN = 64
HP = 128             # lane-dense padded hidden width


def _round_up(v, m):
    return ((v + m - 1) // m) * m


def interblock_kernel(r_ref, src_ref, dst_ref, x_ref,
                      aw_w_ref, aw_b_ref,
                      d1_w_ref, d1_b_ref, d2_w_ref, d2_b_ref,
                      o_ref, h_sc, agg_sc):
    a = pl.program_id(0)                 # atom-tile index ("parallel")
    e = pl.program_id(1)                 # edge-tile index ("arbitrary")
    n_e = pl.num_programs(1)

    TE = r_ref.shape[0]
    A_pad = x_ref.shape[0]
    TA = o_ref.shape[0]

    # ---- init (once per atom tile; safe/idempotent under megacore sharding) -
    @pl.when(e == 0)
    def _():
        h = jnp.dot(x_ref[...], aw_w_ref[...],
                    preferred_element_type=jnp.float32) + aw_b_ref[...]
        h_sc[...] = h.astype(jnp.bfloat16)          # resident gather table
        agg_sc[...] = jnp.zeros_like(agg_sc)

    # ---- filter network for this edge tile ---------------------------------
    r = r_ref[...]                                               # (TE, 1) f32
    C = 0.5 * (jnp.cos(r * (np.pi / CUTOFF)) + 1.0)
    C = C * (r < CUTOFF).astype(jnp.float32)                     # cosine cutoff

    centers = (jax.lax.broadcasted_iota(jnp.int32, (1, RBF_PAD), 1)
               .astype(jnp.float32) * RBF_STEP)                  # in-kernel
    rbf = jnp.exp(-GAMMA * (r - centers) ** 2)                   # (TE, RBF_PAD)

    w1 = jnp.tanh(jnp.dot(rbf.astype(jnp.bfloat16), d1_w_ref[...],
                          preferred_element_type=jnp.float32) + d1_b_ref[...])
    W = jnp.tanh(jnp.dot(w1.astype(jnp.bfloat16), d2_w_ref[...],
                         preferred_element_type=jnp.float32) + d2_b_ref[...])
    W = W * C                                                    # (TE, HP) f32

    # ---- gather / message / scatter-add (one-hot matmuls on the MXU) -------
    # TODO(synk): for very large atom counts replace the O(E*A) one-hot gather
    # with an index-based gather (jnp.take / DMA gather) and keep only the
    # per-tile scatter matmul.
    src = src_ref[...]                                           # (TE, 1) i32
    dst = dst_ref[...]
    full_ids = jax.lax.broadcasted_iota(jnp.int32, (TE, A_pad), 1)
    src_oh = (src == full_ids).astype(jnp.bfloat16)              # (TE, A_pad)
    tile_ids = jax.lax.broadcasted_iota(jnp.int32, (TE, TA), 1) + a * TA
    dst_oh = (dst == tile_ids).astype(jnp.bfloat16)              # (TE, TA)

    x_j = jnp.dot(src_oh, h_sc[...],
                  preferred_element_type=jnp.float32)            # (TE, HP)
    msg = (x_j * W).astype(jnp.bfloat16)
    agg_sc[...] += jax.lax.dot_general(                          # (TA, HP)
        dst_oh, msg, (((0,), (0,)), ((), ())),
        preferred_element_type=jnp.float32)

    # ---- finalize: atom-wise Linear + tanh, then atom-wise Linear -----------
    @pl.when(e == n_e - 1)
    def _():
        aw_w = aw_w_ref[...]
        aw_b = aw_b_ref[...]
        h2 = jnp.tanh(jnp.dot(agg_sc[...], aw_w,
                              preferred_element_type=jnp.float32) + aw_b)
        o_ref[...] = jnp.dot(h2, aw_w,
                             preferred_element_type=jnp.float32) + aw_b


def interblock_pallas(x, r, edge_index, params, *, edge_tile=512, atom_tile=1024):
    A, H = x.shape
    E = r.shape[0]
    assert H == HIDDEN
    assert edge_tile % 8 == 0 and atom_tile % 8 == 0

    TA = min(atom_tile, _round_up(A, 8))
    A_pad = _round_up(A, TA)
    TE = min(edge_tile, _round_up(E, 8))
    E_pad = _round_up(E, TE)
    n_at, n_et = A_pad // TA, E_pad // TE

    # --- pad data (zeros / beyond-cutoff edges -> contributions vanish) ------
    x_p = jnp.zeros((A_pad, HP), jnp.float32).at[:A, :H].set(x.astype(jnp.float32))
    r_p = jnp.full((E_pad, 1), CUTOFF + 1.0, jnp.float32).at[:E, 0].set(
        r.astype(jnp.float32))
    src_p = jnp.zeros((E_pad, 1), jnp.int32).at[:E, 0].set(
        edge_index[0].astype(jnp.int32))
    dst_p = jnp.full((E_pad, 1), -1, jnp.int32).at[:E, 0].set(
        edge_index[1].astype(jnp.int32))

    # --- zero-padded, lane-dense weights (bf16 for the big MXU operands) -----
    aw_w = jnp.zeros((HP, HP), jnp.float32).at[:H, :H].set(params["aw_w"])
    aw_b = jnp.zeros((1, HP), jnp.float32).at[0, :H].set(params["aw_b"])
    d1_w = jnp.zeros((RBF_PAD, HP), jnp.bfloat16).at[:N_RBF, :H].set(
        params["d1_w"].astype(jnp.bfloat16))
    d1_b = jnp.zeros((1, HP), jnp.float32).at[0, :H].set(params["d1_b"])
    d2_w = jnp.zeros((HP, HP), jnp.bfloat16).at[:H, :H].set(
        params["d2_w"].astype(jnp.bfloat16))
    d2_b = jnp.zeros((1, HP), jnp.float32).at[0, :H].set(params["d2_b"])

    args = (r_p, src_p, dst_p, x_p, aw_w, aw_b, d1_w, d1_b, d2_w, d2_b)

    edge_spec = lambda: pl.BlockSpec((TE, 1), lambda a, e: (e, 0))
    const = lambda shape: pl.BlockSpec(shape, lambda a, e: (0, 0))

    flops = int(
        n_at * 2 * A_pad * HP * HP                                 # h (per tile)
        + n_at * E_pad * 2 * HP * (RBF_PAD + HP + A_pad + TA)      # filter+msg
        + 2 * (2 * A_pad * HP * HP))                               # final layers
    transcendentals = int(n_at * E_pad * (RBF_PAD + 1 + 2 * HP) + A_pad * HP)
    bytes_accessed = int(sum(a.size * a.dtype.itemsize for a in args)
                         + A_pad * HP * 4)

    out = pl.pallas_call(
        interblock_kernel,
        out_shape=jax.ShapeDtypeStruct((A_pad, HP), jnp.float32),
        grid_spec=pltpu.PrefetchScalarGridSpec(
            num_scalar_prefetch=0,
            grid=(n_at, n_et),
            in_specs=[edge_spec(), edge_spec(), edge_spec(),
                      const((A_pad, HP)),
                      const((HP, HP)), const((1, HP)),
                      const((RBF_PAD, HP)), const((1, HP)),
                      const((HP, HP)), const((1, HP))],
            out_specs=pl.BlockSpec((TA, HP), lambda a, e: (a, 0)),
            scratch_shapes=[pltpu.VMEM((A_pad, HP), jnp.bfloat16),   # h
                            pltpu.VMEM((TA, HP), jnp.float32)]),     # agg
        compiler_params=pltpu.CompilerParams(
            dimension_semantics=("parallel", "arbitrary"),
            vmem_limit_bytes=48 * 1024 * 1024),
        cost_estimate=pl.CostEstimate(flops=flops,
                                      transcendentals=transcendentals,
                                      bytes_accessed=bytes_accessed),
    )(*args)
    return out[:A, :H]


def interblock_reference(x, r, edge_index, params):
    """Pure-JAX (f32) reference mirroring the PyTorch forward."""
    aw_w, aw_b = params["aw_w"], params["aw_b"]
    h = x @ aw_w + aw_b
    C = 0.5 * (jnp.cos(r * (np.pi / CUTOFF)) + 1.0) * (r < CUTOFF)
    centers = jnp.arange(N_RBF, dtype=jnp.float32) * RBF_STEP
    rbf = jnp.exp(-GAMMA * (r[:, None] - centers[None, :]) ** 2)
    w1 = jnp.tanh(rbf @ params["d1_w"] + params["d1_b"])
    W = jnp.tanh(w1 @ params["d2_w"] + params["d2_b"]) * C[:, None]
    src, dst = edge_index[0], edge_index[1]
    msg = h[src] * W
    agg = jax.ops.segment_sum(msg, dst, num_segments=x.shape[0])
    h2 = jnp.tanh(agg @ aw_w + aw_b)
    return h2 @ aw_w + aw_b


def make_params(key):
    ks = jax.random.split(key, 6)

    def uniform(k, shape, fan_in):
        bound = 1.0 / np.sqrt(fan_in)
        return jax.random.uniform(k, shape, jnp.float32, -bound, bound)

    return {
        # shared atom-wise Linear(64, 64) (stored as (in, out))
        "aw_w": uniform(ks[0], (HIDDEN, HIDDEN), HIDDEN),
        "aw_b": uniform(ks[1], (HIDDEN,), HIDDEN),
        # ContConv dense: Linear(300, 64), Linear(64, 64)
        "d1_w": uniform(ks[2], (N_RBF, HIDDEN), N_RBF),
        "d1_b": uniform(ks[3], (HIDDEN,), N_RBF),
        "d2_w": uniform(ks[4], (HIDDEN, HIDDEN), HIDDEN),
        "d2_b": uniform(ks[5], (HIDDEN,), HIDDEN),
    }


if __name__ == "__main__":
    key = jax.random.PRNGKey(0)
    k_p, k_x, k_r = jax.random.split(key, 3)

    n_atoms, n_edges = 16, 24
    params = make_params(k_p)
    x = jax.random.normal(k_x, (n_atoms, HIDDEN), jnp.float32)
    # distances in [0, 6] so some edges fall beyond the 5.0 cutoff
    r = jax.random.uniform(k_r, (n_edges,), jnp.float32, 0.0, 6.0)
    src = jnp.arange(n_edges, dtype=jnp.int32) % n_atoms
    dst = (3 * jnp.arange(n_edges, dtype=jnp.int32) + 1) % n_atoms
    edge_index = jnp.stack([src, dst], axis=0)

    # small tiles so the test exercises both grid axes (2 atom tiles x 3 edge
    # tiles) and the accumulator init/finalize logic.
    out = interblock_pallas(x, r, edge_index, params, edge_tile=8, atom_tile=8)
    out = jax.block_until_ready(out)

    ref = interblock_reference(x, r, edge_index, params)
    # bf16 MXU operands with f32 accumulation -> small numeric drift vs f32 ref
    np.testing.assert_allclose(np.asarray(out), np.asarray(ref),
                               rtol=2e-2, atol=2e-2)
    print("KERNEL_OK")
</pallas_src>

<mosaic_0001>
module attributes {stable_mosaic.version = 11 : i64} {
  func.func @interblock_kernel(%arg0: i32, %arg1: i32, %arg2: memref<8x1xf32, #tpu.memory_space<vmem>>, %arg3: memref<8x1xi32, #tpu.memory_space<vmem>>, %arg4: memref<8x1xi32, #tpu.memory_space<vmem>>, %arg5: memref<16x128xf32, #tpu.memory_space<vmem>>, %arg6: memref<128x128xf32, #tpu.memory_space<vmem>>, %arg7: memref<1x128xf32, #tpu.memory_space<vmem>>, %arg8: memref<384x128xbf16, #tpu.memory_space<vmem>>, %arg9: memref<1x128xf32, #tpu.memory_space<vmem>>, %arg10: memref<128x128xbf16, #tpu.memory_space<vmem>>, %arg11: memref<1x128xf32, #tpu.memory_space<vmem>>, %arg12: memref<8x128xf32, #tpu.memory_space<vmem>>, %arg13: memref<16x128xbf16, #tpu.memory_space<vmem>>, %arg14: memref<8x128xf32, #tpu.memory_space<vmem>>) attributes {dimension_semantics = [#tpu.dimension_semantics<parallel>, #tpu.dimension_semantics<arbitrary>], iteration_bounds = array<i64: 2, 3>, scalar_prefetch = 0 : i64, scratch_operands = 2 : i64, tpu.core_type = #tpu.core_type<tc>, window_params = [{transform_indices = @transform_0, window_bounds = array<i64: 8, 1>}, {transform_indices = @transform_1, window_bounds = array<i64: 8, 1>}, {transform_indices = @transform_2, window_bounds = array<i64: 8, 1>}, {pipeline_mode = #tpu.pipeline_mode<synchronous>, transform_indices = @transform_3, window_bounds = array<i64: 16, 128>}, {pipeline_mode = #tpu.pipeline_mode<synchronous>, transform_indices = @transform_4, window_bounds = array<i64: 128, 128>}, {pipeline_mode = #tpu.pipeline_mode<synchronous>, transform_indices = @transform_5, window_bounds = array<i64: 1, 128>}, {pipeline_mode = #tpu.pipeline_mode<synchronous>, transform_indices = @transform_6, window_bounds = array<i64: 384, 128>}, {pipeline_mode = #tpu.pipeline_mode<synchronous>, transform_indices = @transform_7, window_bounds = array<i64: 1, 128>}, {pipeline_mode = #tpu.pipeline_mode<synchronous>, transform_indices = @transform_8, window_bounds = array<i64: 128, 128>}, {pipeline_mode = #tpu.pipeline_mode<synchronous>, transform_indices = @transform_9, window_bounds = array<i64: 1, 128>}, {transform_indices = @transform_10, window_bounds = array<i64: 8, 128>}]} {
    %c0_i32 = arith.constant 0 : i32
    %0 = arith.cmpi eq, %arg1, %c0_i32 : i32
    %1 = arith.extui %0 : i1 to i32
    %c0_i32_0 = arith.constant 0 : i32
    %2 = arith.cmpi ne, %1, %c0_i32_0 : i32
    scf.if %2 {
      %c0_30 = arith.constant 0 : index
      %c0_31 = arith.constant 0 : index
      %71 = vector.load %arg5[%c0_30, %c0_31] : memref<16x128xf32, #tpu.memory_space<vmem>>, vector<16x128xf32>
      %c0_32 = arith.constant 0 : index
      %c0_33 = arith.constant 0 : index
      %72 = vector.load %arg6[%c0_32, %c0_33] : memref<128x128xf32, #tpu.memory_space<vmem>>, vector<128x128xf32>
      %cst_34 = arith.constant dense<0.000000e+00> : vector<16x128xf32>
      %73 = tpu.matmul %71, %72, %cst_34 {dimension_numbers = #tpu.dot_dimension_numbers<[1], [0], [0], [1], [0, 0, 1, 1], [], []>} : vector<16x128xf32>, vector<128x128xf32>, vector<16x128xf32> -> vector<16x128xf32>
      %c0_35 = arith.constant 0 : index
      %c0_36 = arith.constant 0 : index
      %74 = vector.load %arg7[%c0_35, %c0_36] : memref<1x128xf32, #tpu.memory_space<vmem>>, vector<1x128xf32>
      %75 = vector.broadcast %74 : vector<1x128xf32> to vector<16x128xf32>
      %76 = arith.addf %73, %75 : vector<16x128xf32>
      %77 = arith.truncf %76 : vector<16x128xf32> to vector<16x128xbf16>
      %c0_37 = arith.constant 0 : index
      %c0_38 = arith.constant 0 : index
      %78 = vector.load %arg13[%c0_37, %c0_38] : memref<16x128xbf16, #tpu.memory_space<vmem>>, vector<16x128xbf16>
      tpu.vector_store %arg13[%c0_37, %c0_38], %77 {strides = array<i32>} : memref<16x128xbf16, #tpu.memory_space<vmem>>, vector<16x128xbf16>,
      %cst_39 = arith.constant 0.000000e+00 : f32
      %79 = vector.broadcast %cst_39 : f32 to vector<8x128xf32>
      %c0_40 = arith.constant 0 : index
      %c0_41 = arith.constant 0 : index
      %80 = vector.load %arg14[%c0_40, %c0_41] : memref<8x128xf32, #tpu.memory_space<vmem>>, vector<8x128xf32>
      tpu.vector_store %arg14[%c0_40, %c0_41], %79 {strides = array<i32>} : memref<8x128xf32, #tpu.memory_space<vmem>>, vector<8x128xf32>,
    } else {
    }
    %c0 = arith.constant 0 : index
    %c0_1 = arith.constant 0 : index
    %3 = vector.load %arg2[%c0, %c0_1] : memref<8x1xf32, #tpu.memory_space<vmem>>, vector<8x1xf32>
    %cst = arith.constant 0.628318548 : f32
    %4 = vector.broadcast %cst : f32 to vector<8x1xf32>
    %5 = arith.mulf %3, %4 : vector<8x1xf32>
    %6 = math.cos %5 : vector<8x1xf32>
    %cst_2 = arith.constant 1.000000e+00 : f32
    %7 = vector.broadcast %cst_2 : f32 to vector<8x1xf32>
    %8 = arith.addf %6, %7 : vector<8x1xf32>
    %cst_3 = arith.constant 5.000000e-01 : f32
    %9 = vector.broadcast %cst_3 : f32 to vector<8x1xf32>
    %10 = arith.mulf %9, %8 : vector<8x1xf32>
    %cst_4 = arith.constant 5.000000e+00 : f32
    %11 = vector.broadcast %cst_4 : f32 to vector<8x1xf32>
    %12 = arith.cmpf olt, %3, %11 : vector<8x1xf32>
    %13 = arith.extui %12 : vector<8x1xi1> to vector<8x1xi32>
    %14 = arith.sitofp %13 : vector<8x1xi32> to vector<8x1xf32>
    %15 = arith.mulf %10, %14 : vector<8x1xf32>
    %16 = tpu.iota {dimensions = array<i32: 1>} : vector<1x384xi32>
    %17 = arith.sitofp %16 : vector<1x384xi32> to vector<1x384xf32>
    %cst_5 = arith.constant 1.000000e-01 : f32
    %18 = vector.broadcast %cst_5 : f32 to vector<1x384xf32>
    %19 = arith.mulf %17, %18 : vector<1x384xf32>
    %20 = vector.broadcast %3 : vector<8x1xf32> to vector<8x384xf32>
    %21 = vector.broadcast %19 : vector<1x384xf32> to vector<8x384xf32>
    %22 = arith.subf %20, %21 : vector<8x384xf32>
    %23 = arith.mulf %22, %22 : vector<8x384xf32>
    %cst_6 = arith.constant -1.000000e+01 : f32
    %24 = vector.broadcast %cst_6 : f32 to vector<8x384xf32>
    %25 = arith.mulf %24, %23 : vector<8x384xf32>
    %26 = math.exp %25 : vector<8x384xf32>
    %27 = arith.truncf %26 : vector<8x384xf32> to vector<8x384xbf16>
    %c0_7 = arith.constant 0 : index
    %c0_8 = arith.constant 0 : index
    %28 = vector.load %arg8[%c0_7, %c0_8] : memref<384x128xbf16, #tpu.memory_space<vmem>>, vector<384x128xbf16>
    %cst_9 = arith.constant dense<0.000000e+00> : vector<8x128xf32>
    %29 = tpu.matmul %27, %28, %cst_9 {dimension_numbers = #tpu.dot_dimension_numbers<[1], [0], [0], [1], [0, 0, 1, 1], [], []>} : vector<8x384xbf16>, vector<384x128xbf16>, vector<8x128xf32> -> vector<8x128xf32>
    %c0_10 = arith.constant 0 : index
    %c0_11 = arith.constant 0 : index
    %30 = vector.load %arg9[%c0_10, %c0_11] : memref<1x128xf32, #tpu.memory_space<vmem>>, vector<1x128xf32>
    %31 = vector.broadcast %30 : vector<1x128xf32> to vector<8x128xf32>
    %32 = arith.addf %29, %31 : vector<8x128xf32>
    %33 = math.tanh %32 : vector<8x128xf32>
    %34 = arith.truncf %33 : vector<8x128xf32> to vector<8x128xbf16>
    %c0_12 = arith.constant 0 : index
    %c0_13 = arith.constant 0 : index
    %35 = vector.load %arg10[%c0_12, %c0_13] : memref<128x128xbf16, #tpu.memory_space<vmem>>, vector<128x128xbf16>
    %cst_14 = arith.constant dense<0.000000e+00> : vector<8x128xf32>
    %36 = tpu.matmul %34, %35, %cst_14 {dimension_numbers = #tpu.dot_dimension_numbers<[1], [0], [0], [1], [0, 0, 1, 1], [], []>} : vector<8x128xbf16>, vector<128x128xbf16>, vector<8x128xf32> -> vector<8x128xf32>
    %c0_15 = arith.constant 0 : index
    %c0_16 = arith.constant 0 : index
    %37 = vector.load %arg11[%c0_15, %c0_16] : memref<1x128xf32, #tpu.memory_space<vmem>>, vector<1x128xf32>
    %38 = vector.broadcast %37 : vector<1x128xf32> to vector<8x128xf32>
    %39 = arith.addf %36, %38 : vector<8x128xf32>
    %40 = math.tanh %39 : vector<8x128xf32>
    %41 = vector.broadcast %15 : vector<8x1xf32> to vector<8x128xf32>
    %42 = arith.mulf %40, %41 : vector<8x128xf32>
    %c0_17 = arith.constant 0 : index
    %c0_18 = arith.constant 0 : index
    %43 = vector.load %arg3[%c0_17, %c0_18] : memref<8x1xi32, #tpu.memory_space<vmem>>, vector<8x1xi32>
    %c0_19 = arith.constant 0 : index
    %c0_20 = arith.constant 0 : index
    %44 = vector.load %arg4[%c0_19, %c0_20] : memref<8x1xi32, #tpu.memory_space<vmem>>, vector<8x1xi32>
    %45 = tpu.iota {dimensions = array<i32: 1>} : vector<8x16xi32>
    %46 = vector.broadcast %43 : vector<8x1xi32> to vector<8x16xi32>
    %47 = arith.cmpi eq, %46, %45 : vector<8x16xi32>
    %48 = arith.extui %47 : vector<8x16xi1> to vector<8x16xi32>
    %49 = arith.sitofp %48 : vector<8x16xi32> to vector<8x16xf32>
    %50 = arith.truncf %49 : vector<8x16xf32> to vector<8x16xbf16>
    %51 = tpu.iota {dimensions = array<i32: 1>} : vector<8x8xi32>
    %c8_i32 = arith.constant 8 : i32
    %52 = arith.muli %arg0, %c8_i32 : i32
    %53 = vector.broadcast %52 : i32 to vector<8x8xi32>
    %54 = arith.addi %51, %53 : vector<8x8xi32>
    %55 = vector.broadcast %44 : vector<8x1xi32> to vector<8x8xi32>
    %56 = arith.cmpi eq, %55, %54 : vector<8x8xi32>
    %57 = arith.extui %56 : vector<8x8xi1> to vector<8x8xi32>
    %58 = arith.sitofp %57 : vector<8x8xi32> to vector<8x8xf32>
    %59 = arith.truncf %58 : vector<8x8xf32> to vector<8x8xbf16>
    %c0_21 = arith.constant 0 : index
    %c0_22 = arith.constant 0 : index
    %60 = vector.load %arg13[%c0_21, %c0_22] : memref<16x128xbf16, #tpu.memory_space<vmem>>, vector<16x128xbf16>
    %cst_23 = arith.constant dense<0.000000e+00> : vector<8x128xf32>
    %61 = tpu.matmul %50, %60, %cst_23 {dimension_numbers = #tpu.dot_dimension_numbers<[1], [0], [0], [1], [0, 0, 1, 1], [], []>} : vector<8x16xbf16>, vector<16x128xbf16>, vector<8x128xf32> -> vector<8x128xf32>
    %62 = arith.mulf %61, %42 : vector<8x128xf32>
    %63 = arith.truncf %62 : vector<8x128xf32> to vector<8x128xbf16>
    %c0_24 = arith.constant 0 : index
    %c0_25 = arith.constant 0 : index
    %64 = vector.load %arg14[%c0_24, %c0_25] : memref<8x128xf32, #tpu.memory_space<vmem>>, vector<8x128xf32>
    %cst_26 = arith.constant dense<0.000000e+00> : vector<8x128xf32>
    %65 = tpu.matmul %59, %63, %cst_26 {dimension_numbers = #tpu.dot_dimension_numbers<[0], [0], [1], [1], [0, 1, 1, 1], [], []>} : vector<8x8xbf16>, vector<8x128xbf16>, vector<8x128xf32> -> vector<8x128xf32>
    %66 = arith.addf %64, %65 : vector<8x128xf32>
    %c0_27 = arith.constant 0 : index
    %c0_28 = arith.constant 0 : index
    %67 = vector.load %arg14[%c0_27, %c0_28] : memref<8x128xf32, #tpu.memory_space<vmem>>, vector<8x128xf32>
    tpu.vector_store %arg14[%c0_27, %c0_28], %66 {strides = array<i32>} : memref<8x128xf32, #tpu.memory_space<vmem>>, vector<8x128xf32>,
    %c2_i32 = arith.constant 2 : i32
    %68 = arith.cmpi eq, %arg1, %c2_i32 : i32
    %69 = arith.extui %68 : i1 to i32
    %c0_i32_29 = arith.constant 0 : i32
    %70 = arith.cmpi ne, %69, %c0_i32_29 : i32
    scf.if %70 {
      %c0_30 = arith.constant 0 : index
      %c0_31 = arith.constant 0 : index
      %71 = vector.load %arg6[%c0_30, %c0_31] : memref<128x128xf32, #tpu.memory_space<vmem>>, vector<128x128xf32>
      %c0_32 = arith.constant 0 : index
      %c0_33 = arith.constant 0 : index
      %72 = vector.load %arg7[%c0_32, %c0_33] : memref<1x128xf32, #tpu.memory_space<vmem>>, vector<1x128xf32>
      %c0_34 = arith.constant 0 : index
      %c0_35 = arith.constant 0 : index
      %73 = vector.load %arg14[%c0_34, %c0_35] : memref<8x128xf32, #tpu.memory_space<vmem>>, vector<8x128xf32>
      %cst_36 = arith.constant dense<0.000000e+00> : vector<8x128xf32>
      %74 = tpu.matmul %73, %71, %cst_36 {dimension_numbers = #tpu.dot_dimension_numbers<[1], [0], [0], [1], [0, 0, 1, 1], [], []>} : vector<8x128xf32>, vector<128x128xf32>, vector<8x128xf32> -> vector<8x128xf32>
      %75 = vector.broadcast %72 : vector<1x128xf32> to vector<8x128xf32>
      %76 = arith.addf %74, %75 : vector<8x128xf32>
      %77 = math.tanh %76 : vector<8x128xf32>
      %cst_37 = arith.constant dense<0.000000e+00> : vector<8x128xf32>
      %78 = tpu.matmul %77, %71, %cst_37 {dimension_numbers = #tpu.dot_dimension_numbers<[1], [0], [0], [1], [0, 0, 1, 1], [], []>} : vector<8x128xf32>, vector<128x128xf32>, vector<8x128xf32> -> vector<8x128xf32>
      %79 = vector.broadcast %72 : vector<1x128xf32> to vector<8x128xf32>
      %80 = arith.addf %78, %79 : vector<8x128xf32>
      %c0_38 = arith.constant 0 : index
      %c0_39 = arith.constant 0 : index
      %81 = vector.load %arg12[%c0_38, %c0_39] : memref<8x128xf32, #tpu.memory_space<vmem>>, vector<8x128xf32>
      tpu.vector_store %arg12[%c0_38, %c0_39], %80 {strides = array<i32>} : memref<8x128xf32, #tpu.memory_space<vmem>>, vector<8x128xf32>,
    } else {
    }
    return
  }
  func.func @transform_0(%arg0: i32, %arg1: i32) -> (i32, i32) {
    %c0_i32 = arith.constant 0 : i32
    %c0_i32_0 = arith.constant 0 : i32
    return %arg1, %c0_i32 : i32, i32
  }
  func.func @transform_1(%arg0: i32, %arg1: i32) -> (i32, i32) {
    %c0_i32 = arith.constant 0 : i32
    %c0_i32_0 = arith.constant 0 : i32
    return %arg1, %c0_i32 : i32, i32
  }
  func.func @transform_2(%arg0: i32, %arg1: i32) -> (i32, i32) {
    %c0_i32 = arith.constant 0 : i32
    %c0_i32_0 = arith.constant 0 : i32
    return %arg1, %c0_i32 : i32, i32
  }
  func.func @transform_3(%arg0: i32, %arg1: i32) -> (i32, i32) {
    %c0_i32 = arith.constant 0 : i32
    %c0_i32_0 = arith.constant 0 : i32
    %c0_i32_1 = arith.constant 0 : i32
    return %c0_i32, %c0_i32_0 : i32, i32
  }
  func.func @transform_4(%arg0: i32, %arg1: i32) -> (i32, i32) {
    %c0_i32 = arith.constant 0 : i32
    %c0_i32_0 = arith.constant 0 : i32
    %c0_i32_1 = arith.constant 0 : i32
    return %c0_i32, %c0_i32_0 : i32, i32
  }
  func.func @transform_5(%arg0: i32, %arg1: i32) -> (i32, i32) {
    %c0_i32 = arith.constant 0 : i32
    %c0_i32_0 = arith.constant 0 : i32
    %c0_i32_1 = arith.constant 0 : i32
    return %c0_i32, %c0_i32_0 : i32, i32
  }
  func.func @transform_6(%arg0: i32, %arg1: i32) -> (i32, i32) {
    %c0_i32 = arith.constant 0 : i32
    %c0_i32_0 = arith.constant 0 : i32
    %c0_i32_1 = arith.constant 0 : i32
    return %c0_i32, %c0_i32_0 : i32, i32
  }
  func.func @transform_7(%arg0: i32, %arg1: i32) -> (i32, i32) {
    %c0_i32 = arith.constant 0 : i32
    %c0_i32_0 = arith.constant 0 : i32
    %c0_i32_1 = arith.constant 0 : i32
    return %c0_i32, %c0_i32_0 : i32, i32
  }
  func.func @transform_8(%arg0: i32, %arg1: i32) -> (i32, i32) {
    %c0_i32 = arith.constant 0 : i32
    %c0_i32_0 = arith.constant 0 : i32
    %c0_i32_1 = arith.constant 0 : i32
    return %c0_i32, %c0_i32_0 : i32, i32
  }
  func.func @transform_9(%arg0: i32, %arg1: i32) -> (i32, i32) {
    %c0_i32 = arith.constant 0 : i32
    %c0_i32_0 = arith.constant 0 : i32
    %c0_i32_1 = arith.constant 0 : i32
    return %c0_i32, %c0_i32_0 : i32, i32
  }
  func.func @transform_10(%arg0: i32, %arg1: i32) -> (i32, i32) {
    %c0_i32 = arith.constant 0 : i32
    %c0_i32_0 = arith.constant 0 : i32
    return %arg0, %c0_i32 : i32, i32
  }
}

</mosaic_0001>

<llo_original>
// kernel: tpu_custom_call.1
$region0: #{tpu_custom_call.1}
  #allocation0 [shape = 'u32[]', space=smem, size = 0x4, offset = 0x4, fixed_abs, tag = 'smem constant byte address 0x4 - core index']
  #allocation1 [shape = 'u32[144,128]{1,0:T(1,128)}', space=vmem, size = 0x12000, scoped, tag = 'internal scratch']
  #allocation2 [shape = 'bf16[16,128]{1,0:T(16,128)(2,1)}', space=vmem, size = 0x1000, scoped, tag = 'scratch operand']
  #allocation3 [shape = 'f32[8,128]{1,0:T(8,128)}', space=vmem, size = 0x1000, scoped, tag = 'scratch operand']
  %s0 = inlined_call_operand.vmem [shape: f32[24,1], index: 0, kind: input, shape index: {}]
  %s1 = inlined_call_operand.vmem [shape: s32[24,1], index: 1, kind: input, shape index: {}]
  %s2 = inlined_call_operand.vmem [shape: s32[24,1], index: 2, kind: input, shape index: {}]
  %s3 = inlined_call_operand.vmem [shape: f32[16,128], index: 3, kind: input, shape index: {}]
  %s4 = inlined_call_operand.hbm [shape: f32[128,128], index: 4, kind: input, shape index: {}]
  %s5 = inlined_call_operand.vmem [shape: f32[1,128], index: 5, kind: input, shape index: {}]
  %s6 = inlined_call_operand.hbm [shape: bf16[384,128], index: 6, kind: input, shape index: {}]
  %s7 = inlined_call_operand.vmem [shape: f32[1,128], index: 7, kind: input, shape index: {}]
  %s8 = inlined_call_operand.vmem [shape: bf16[128,128], index: 8, kind: input, shape index: {}]
  %s9 = inlined_call_operand.vmem [shape: f32[1,128], index: 9, kind: input, shape index: {}]
  %s10 = inlined_call_operand.hbm [shape: f32[16,128], index: 10, kind: output, shape index: {}]
  %s11 = sld [smem:[#allocation0]]
  $region89: #{tpu_custom_call.1} parent=0
    _
  %s13 = ssub.s32 1, %s11
  %s14 = scalar_select 0, %s13, %s11
  $region1: #{tpu_custom_call.1} parent=0
    #allocation4 [shape = 'u8[65536]{0}', space=vmem, size = 0x10000, scoped, tag = 'input window, operand 4, single buffered']
    #allocation5 [shape = 's32[2]{0}', space=sflag, size = 0x8, scoped, tag = 'scoped memory for tpu_custom_call.1']
    #allocation6 [shape = 's32[2]{0}', space=sflag, size = 0x8, scoped, tag = 'scoped memory for tpu_custom_call.1']
    #allocation7 [shape = 'u8[98304]{0}', space=vmem, size = 0x18000, scoped, tag = 'input window, operand 6, single buffered']
    #allocation8 [shape = 's32[1]{0}', space=sflag, size = 0x4, scoped, tag = 'scoped memory for tpu_custom_call.1']
    #allocation9 [shape = 'u8[8192]{0}', space=vmem, size = 0x2000, scoped, tag = 'output window, operand 0']
    %15 = vsyncpa [#allocation5], 0
    %16 = vsyncpa [#allocation8], 0
    %17 = vsyncpa [#allocation6], 0
    %s18 = scalar_lea.sflag [#allocation6], 1
    %19 = vsyncpa %s18, 0
    loop: start=0, step=1, limit=8
    $region2: #{tpu_custom_call.1} parent=1 // loop_pre_header
      _
    $region3: #{tpu_custom_call.1} parent=1 // loop_header
      %s21 = sphi 0, %s25
      %p22 = scmp.ge.s32.totalorder %s21, 8
      %s28 = sphi 0, %s40
      %s29 = sphi 0, %s36
      %s30 = sphi 0, %s28
      %s31 = sphi 0, %s29
      %s32 = sphi 0, %s30
      %s33 = sphi 0, %s31
      %s43 = sphi 0, %s45
      %s46 = sphi 0, %s43
      %s47 = sphi 0, %s46
      %s63 = sphi 0, %s47
      %s69 = sphi 0, %s71
      %s72 = sphi 0, %s69
      %s73 = sphi 0, %s72
      %s89 = sphi 0, %s73
      %s95 = sphi 0, %s97
      %s98 = sphi 0, %s95
      %s99 = sphi 0, %s98
      %s115 = sphi 0, %s99
      %s119 = sphi 0, %s119
      %s121 = sphi 0, %s119
      %s122 = sphi 0, %s121
      %s136 = sphi 0, %s122
      %s140 = sphi 0, %s140
      %s142 = sphi 0, %s140
      %s143 = sphi 0, %s142
      %s157 = sphi 0, %s143
      %s161 = sphi 0, %s161
      %s163 = sphi 0, %s161
      %s164 = sphi 0, %s163
      %s178 = sphi 0, %s164
      %s182 = sphi 0, %s182
      %s184 = sphi 0, %s182
      %s185 = sphi 0, %s184
      %s199 = sphi 0, %s185
      %s203 = sphi 0, %s203
      %s205 = sphi 0, %s203
      %s206 = sphi 0, %s205
      %s220 = sphi 0, %s206
      %s224 = sphi 0, %s224
      %s226 = sphi 0, %s224
      %s227 = sphi 0, %s226
      %s241 = sphi 0, %s227
      %s245 = sphi 0, %s245
      %s247 = sphi 0, %s245
      %s248 = sphi 0, %s247
      %s262 = sphi 0, %s248
      %s268 = sphi 0, %s270
      %s271 = sphi 0, %s268
      %s272 = sphi 0, %s271
      %s288 = sphi 0, %s272
    $region4: #{tpu_custom_call.1} parent=1 // loop_header_branch
      %24 = sbr.rel (%p22) target = $region8
    $region5: #{tpu_custom_call.1} parent=1 // loop_body
      %s26 = ssub.s32 %s21, 1
      %s27 = ssub.s32 %s21, 2
      %s34 = sadd.s32 1, %s29
      %p35 = scmp.ge.s32.totalorder %s34, 3
      %s36 = scalar_select %p35, 0, %s34
      %s37 = sadd.s32 1, %s28
      %s38 = scalar_select %p35, %s37, %s28
      %p39 = scmp.ge.s32.totalorder %s38, 2
      %s40 = scalar_select %p39, 0, %s38
      %s41 = ssub.s32 %s29, %s36
      %p42 = scmp.eq.s32.totalorder %s41, 0
      %s44 = sadd.s32 %s43, 1
      %s45 = scalar_select %p42, %s43, %s44
      %p48 = pneg %p42
      %p49 = scmp.eq.s32.totalorder %s21, 5
      %p50 = por %p48, %p49
      %p51 = scmp.ne.s32.totalorder %s43, %s46
      %p52 = scmp.eq.s32.totalorder %s21, 0
      %p53 = por %p51, %p52
      %p54 = scmp.ne.s32.totalorder %s43, %s46
      %p55 = scmp.eq.s32.totalorder %s26, 5
      %p56 = por %p54, %p55
      %p57 = scmp.ne.s32.totalorder %s46, %s47
      %p58 = scmp.eq.s32.totalorder %s26, 0
      %p59 = por %p57, %p58
      %p60 = scmp.ne.s32.totalorder %s46, %s47
      %p61 = scmp.eq.s32.totalorder %s27, 5
      %p62 = por %p60, %p61
      %p64 = scmp.ne.s32.totalorder %s47, %s63
      %p65 = scmp.eq.s32.totalorder %s27, 0
      %p66 = por %p64, %p65
      %s67 = ssub.s32 %s29, %s36
      %p68 = scmp.eq.s32.totalorder %s67, 0
      %s70 = sadd.s32 %s69, 1
      %s71 = scalar_select %p68, %s69, %s70
      %p74 = pneg %p68
      %p75 = scmp.eq.s32.totalorder %s21, 5
      %p76 = por %p74, %p75
      %p77 = scmp.ne.s32.totalorder %s69, %s72
      %p78 = scmp.eq.s32.totalorder %s21, 0
      %p79 = por %p77, %p78
      %p80 = scmp.ne.s32.totalorder %s69, %s72
      %p81 = scmp.eq.s32.totalorder %s26, 5
      %p82 = por %p80, %p81
      %p83 = scmp.ne.s32.totalorder %s72, %s73
      %p84 = scmp.eq.s32.totalorder %s26, 0
      %p85 = por %p83, %p84
      %p86 = scmp.ne.s32.totalorder %s72, %s73
      %p87 = scmp.eq.s32.totalorder %s27, 5
      %p88 = por %p86, %p87
      %p90 = scmp.ne.s32.totalorder %s73, %s89
      %p91 = scmp.eq.s32.totalorder %s27, 0
      %p92 = por %p90, %p91
      %s93 = ssub.s32 %s29, %s36
      %p94 = scmp.eq.s32.totalorder %s93, 0
      %s96 = sadd.s32 %s95, 1
      %s97 = scalar_select %p94, %s95, %s96
      %p100 = pneg %p94
      %p101 = scmp.eq.s32.totalorder %s21, 5
      %p102 = por %p100, %p101
      %p103 = scmp.ne.s32.totalorder %s95, %s98
      %p104 = scmp.eq.s32.totalorder %s21, 0
      %p105 = por %p103, %p104
      %p106 = scmp.ne.s32.totalorder %s95, %s98
      %p107 = scmp.eq.s32.totalorder %s26, 5
      %p108 = por %p106, %p107
      %p109 = scmp.ne.s32.totalorder %s98, %s99
      %p110 = scmp.eq.s32.totalorder %s26, 0
      %p111 = por %p109, %p110
      %p112 = scmp.ne.s32.totalorder %s98, %s99
      %p113 = scmp.eq.s32.totalorder %s27, 5
      %p114 = por %p112, %p113
      %p116 = scmp.ne.s32.totalorder %s99, %s115
      %p117 = scmp.eq.s32.totalorder %s27, 0
      %p118 = por %p116, %p117
      %s120 = sadd.s32 %s119, 1
      %p123 = scmp.eq.s32.totalorder %s21, 5
      %p124 = scmp.ne.s32.totalorder %s119, %s121
      %p125 = scmp.eq.s32.totalorder %s21, 0
      %p126 = por %p124, %p125
      %p127 = scmp.ne.s32.totalorder %s119, %s121
      %p128 = scmp.eq.s32.totalorder %s26, 5
      %p129 = por %p127, %p128
      %p130 = scmp.ne.s32.totalorder %s121, %s122
      %p131 = scmp.eq.s32.totalorder %s26, 0
      %p132 = por %p130, %p131
      %p133 = scmp.ne.s32.totalorder %s121, %s122
      %p134 = scmp.eq.s32.totalorder %s27, 5
      %p135 = por %p133, %p134
      %p137 = scmp.ne.s32.totalorder %s122, %s136
      %p138 = scmp.eq.s32.totalorder %s27, 0
      %p139 = por %p137, %p138
      %s141 = sadd.s32 %s140, 1
      %p144 = scmp.eq.s32.totalorder %s21, 5
      %p145 = scmp.ne.s32.totalorder %s140, %s142
      %p146 = scmp.eq.s32.totalorder %s21, 0
      %p147 = por %p145, %p146
      %p148 = scmp.ne.s32.totalorder %s140, %s142
      %p149 = scmp.eq.s32.totalorder %s26, 5
      %p150 = por %p148, %p149
      %p151 = scmp.ne.s32.totalorder %s142, %s143
      %p152 = scmp.eq.s32.totalorder %s26, 0
      %p153 = por %p151, %p152
      %p154 = scmp.ne.s32.totalorder %s142, %s143
      %p155 = scmp.eq.s32.totalorder %s27, 5
      %p156 = por %p154, %p155
      %p158 = scmp.ne.s32.totalorder %s143, %s157
      %p159 = scmp.eq.s32.totalorder %s27, 0
      %p160 = por %p158, %p159
      %s162 = sadd.s32 %s161, 1
      %p165 = scmp.eq.s32.totalorder %s21, 5
      %p166 = scmp.ne.s32.totalorder %s161, %s163
      %p167 = scmp.eq.s32.totalorder %s21, 0
      %p168 = por %p166, %p167
      %p169 = scmp.ne.s32.totalorder %s161, %s163
      %p170 = scmp.eq.s32.totalorder %s26, 5
      %p171 = por %p169, %p170
      %p172 = scmp.ne.s32.totalorder %s163, %s164
      %p173 = scmp.eq.s32.totalorder %s26, 0
      %p174 = por %p172, %p173
      %p175 = scmp.ne.s32.totalorder %s163, %s164
      %p176 = scmp.eq.s32.totalorder %s27, 5
      %p177 = por %p175, %p176
      %p179 = scmp.ne.s32.totalorder %s164, %s178
      %p180 = scmp.eq.s32.totalorder %s27, 0
      %p181 = por %p179, %p180
      %s183 = sadd.s32 %s182, 1
      %p186 = scmp.eq.s32.totalorder %s21, 5
      %p187 = scmp.ne.s32.totalorder %s182, %s184
      %p188 = scmp.eq.s32.totalorder %s21, 0
      %p189 = por %p187, %p188
      %p190 = scmp.ne.s32.totalorder %s182, %s184
      %p191 = scmp.eq.s32.totalorder %s26, 5
      %p192 = por %p190, %p191
      %p193 = scmp.ne.s32.totalorder %s184, %s185
      %p194 = scmp.eq.s32.totalorder %s26, 0
      %p195 = por %p193, %p194
      %p196 = scmp.ne.s32.totalorder %s184, %s185
      %p197 = scmp.eq.s32.totalorder %s27, 5
      %p198 = por %p196, %p197
      %p200 = scmp.ne.s32.totalorder %s185, %s199
      %p201 = scmp.eq.s32.totalorder %s27, 0
      %p202 = por %p200, %p201
      %s204 = sadd.s32 %s203, 1
      %p207 = scmp.eq.s32.totalorder %s21, 5
      %p208 = scmp.ne.s32.totalorder %s203, %s205
      %p209 = scmp.eq.s32.totalorder %s21, 0
      %p210 = por %p208, %p209
      %p211 = scmp.ne.s32.totalorder %s203, %s205
      %p212 = scmp.eq.s32.totalorder %s26, 5
      %p213 = por %p211, %p212
      %p214 = scmp.ne.s32.totalorder %s205, %s206
      %p215 = scmp.eq.s32.totalorder %s26, 0
      %p216 = por %p214, %p215
      %p217 = scmp.ne.s32.totalorder %s205, %s206
      %p218 = scmp.eq.s32.totalorder %s27, 5
      %p219 = por %p217, %p218
      %p221 = scmp.ne.s32.totalorder %s206, %s220
      %p222 = scmp.eq.s32.totalorder %s27, 0
      %p223 = por %p221, %p222
      %s225 = sadd.s32 %s224, 1
      %p228 = scmp.eq.s32.totalorder %s21, 5
      %p229 = scmp.ne.s32.totalorder %s224, %s226
      %p230 = scmp.eq.s32.totalorder %s21, 0
      %p231 = por %p229, %p230
      %p232 = scmp.ne.s32.totalorder %s224, %s226
      %p233 = scmp.eq.s32.totalorder %s26, 5
      %p234 = por %p232, %p233
      %p235 = scmp.ne.s32.totalorder %s226, %s227
      %p236 = scmp.eq.s32.totalorder %s26, 0
      %p237 = por %p235, %p236
      %p238 = scmp.ne.s32.totalorder %s226, %s227
      %p239 = scmp.eq.s32.totalorder %s27, 5
      %p240 = por %p238, %p239
      %p242 = scmp.ne.s32.totalorder %s227, %s241
      %p243 = scmp.eq.s32.totalorder %s27, 0
      %p244 = por %p242, %p243
      %s246 = sadd.s32 %s245, 1
      %p249 = scmp.eq.s32.totalorder %s21, 5
      %p250 = scmp.ne.s32.totalorder %s245, %s247
      %p251 = scmp.eq.s32.totalorder %s21, 0
      %p252 = por %p250, %p251
      %p253 = scmp.ne.s32.totalorder %s245, %s247
      %p254 = scmp.eq.s32.totalorder %s26, 5
      %p255 = por %p253, %p254
      %p256 = scmp.ne.s32.totalorder %s247, %s248
      %p257 = scmp.eq.s32.totalorder %s26, 0
      %p258 = por %p256, %p257
      %p259 = scmp.ne.s32.totalorder %s247, %s248
      %p260 = scmp.eq.s32.totalorder %s27, 5
      %p261 = por %p259, %p260
      %p263 = scmp.ne.s32.totalorder %s248, %s262
      %p264 = scmp.eq.s32.totalorder %s27, 0
      %p265 = por %p263, %p264
      %s266 = ssub.s32 %s28, %s40
      %p267 = scmp.eq.s32.totalorder %s266, 0
      %s269 = sadd.s32 %s268, 1
      %s270 = scalar_select %p267, %s268, %s269
      %p273 = pneg %p267
      %p274 = scmp.eq.s32.totalorder %s21, 5
      %p275 = por %p273, %p274
      %p276 = scmp.ne.s32.totalorder %s268, %s271
      %p277 = scmp.eq.s32.totalorder %s21, 0
      %p278 = por %p276, %p277
      %p279 = scmp.ne.s32.totalorder %s268, %s271
      %p280 = scmp.eq.s32.totalorder %s26, 5
      %p281 = por %p279, %p280
      %p282 = scmp.ne.s32.totalorder %s271, %s272
      %p283 = scmp.eq.s32.totalorder %s26, 0
      %p284 = por %p282, %p283
      %p285 = scmp.ne.s32.totalorder %s271, %s272
      %p286 = scmp.eq.s32.totalorder %s27, 5
      %p287 = por %p285, %p286
      %p289 = scmp.ne.s32.totalorder %s272, %s288
      %p290 = scmp.eq.s32.totalorder %s27, 0
      %p291 = por %p289, %p290
      %p292 = scmp.le.s32.totalorder 1, %s21
      %p293 = scmp.lt.s32.totalorder %s21, 7
      %p294 = pnand %p292, %p293
      %p295 = pneg %p294
      // Predicated region
      $region9: #{tpu_custom_call.1} parent=5 // pred_check
        _
      $region10: #{tpu_custom_call.1} parent=5 // pred_check_branch
        %297 = sbr.rel (%p294) target = $region12
      $region11: #{tpu_custom_call.1} parent=5 // pred_region
        %s298 = ssub.s32 %s21, 1
        // Predicated region
        $region13: #{tpu_custom_call.1} parent=11 // pred_check
          %p299 = pneg %p132
        $region14: #{tpu_custom_call.1} parent=11 // pred_check_branch
          %301 = sbr.rel (%p299) target = $region16
        $region15: #{tpu_custom_call.1} parent=11 // pred_region
          _
        $region16: #{tpu_custom_call.1} parent=11 // pred_fallthru
          _
        // Predicated region
        $region17: #{tpu_custom_call.1} parent=11 // pred_check
          %p302 = pneg %p153
        $region18: #{tpu_custom_call.1} parent=11 // pred_check_branch
          %304 = sbr.rel (%p302) target = $region20
        $region19: #{tpu_custom_call.1} parent=11 // pred_region
          %s306 = ssub.s32 2048, 2048
          %307 = vsyncadd [#allocation5], %s306
          %s308 = sshll.u32 [#allocation4], 4
          %s309 = int_to_ptr.vmem [resolvable:$true] %s308
          %314 = dma.hbm_to_vmem [thread:$0]  %s4, 2048, %s309, [#allocation5], 128, 128, 8
        $region20: #{tpu_custom_call.1} parent=11 // pred_fallthru
          _
        // Predicated region
        $region21: #{tpu_custom_call.1} parent=11 // pred_check
          %p315 = pneg %p174
        $region22: #{tpu_custom_call.1} parent=11 // pred_check_branch
          %317 = sbr.rel (%p315) target = $region24
        $region23: #{tpu_custom_call.1} parent=11 // pred_region
          _
        $region24: #{tpu_custom_call.1} parent=11 // pred_fallthru
          _
        // Predicated region
        $region25: #{tpu_custom_call.1} parent=11 // pred_check
          %p318 = pneg %p195
        $region26: #{tpu_custom_call.1} parent=11 // pred_check_branch
          %320 = sbr.rel (%p318) target = $region28
        $region27: #{tpu_custom_call.1} parent=11 // pred_region
          %s322 = ssub.s32 3072, 3072
          %323 = vsyncadd [#allocation8], %s322
          %s324 = sshll.u32 [#allocation7], 4
          %s325 = int_to_ptr.vmem [resolvable:$true] %s324
          %330 = dma.hbm_to_vmem [thread:$0]  %s6, 3072, %s325, [#allocation8], 64, 64, 4
        $region28: #{tpu_custom_call.1} parent=11 // pred_fallthru
          _
        // Predicated region
        $region29: #{tpu_custom_call.1} parent=11 // pred_check
          %p331 = pneg %p216
        $region30: #{tpu_custom_call.1} parent=11 // pred_check_branch
          %333 = sbr.rel (%p331) target = $region32
        $region31: #{tpu_custom_call.1} parent=11 // pred_region
          _
        $region32: #{tpu_custom_call.1} parent=11 // pred_fallthru
          _
        // Predicated region
        $region33: #{tpu_custom_call.1} parent=11 // pred_check
          %p334 = pneg %p237
        $region34: #{tpu_custom_call.1} parent=11 // pred_check_branch
          %336 = sbr.rel (%p334) target = $region36
        $region35: #{tpu_custom_call.1} parent=11 // pred_region
          _
        $region36: #{tpu_custom_call.1} parent=11 // pred_fallthru
          _
        // Predicated region
        $region37: #{tpu_custom_call.1} parent=11 // pred_check
          %p337 = pneg %p258
        $region38: #{tpu_custom_call.1} parent=11 // pred_check_branch
          %339 = sbr.rel (%p337) target = $region40
        $region39: #{tpu_custom_call.1} parent=11 // pred_region
          _
        $region40: #{tpu_custom_call.1} parent=11 // pred_fallthru
          _
      $region12: #{tpu_custom_call.1} parent=5 // pred_fallthru
        _
      %p340 = scmp.lt.s32.totalorder %s21, 6
      // Predicated region
      $region41: #{tpu_custom_call.1} parent=5 // pred_check
        %p341 = pneg %p340
      $region42: #{tpu_custom_call.1} parent=5 // pred_check_branch
        %343 = sbr.rel (%p341) target = $region44
      $region43: #{tpu_custom_call.1} parent=5 // pred_region
        // Predicated region
        $region45: #{tpu_custom_call.1} parent=43 // pred_check
          %p344 = pneg %p53
        $region46: #{tpu_custom_call.1} parent=43 // pred_check_branch
          %346 = sbr.rel (%p344) target = $region48
        $region47: #{tpu_custom_call.1} parent=43 // pred_region
          %p347 = scmp.lt.s32.totalorder %s29, 2
          %s348 = scalar_select %p347, %s29, 2
          %s349 = smul.addr %s348, 8
          %s350 = scalar_lea.vmem %s0, %s349
        $region48: #{tpu_custom_call.1} parent=43 // pred_fallthru
          _
        // Predicated region
        $region49: #{tpu_custom_call.1} parent=43 // pred_check
          %p351 = pneg %p79
        $region50: #{tpu_custom_call.1} parent=43 // pred_check_branch
          %353 = sbr.rel (%p351) target = $region52
        $region51: #{tpu_custom_call.1} parent=43 // pred_region
          %p354 = scmp.lt.s32.totalorder %s29, 2
          %s355 = scalar_select %p354, %s29, 2
          %s356 = smul.addr %s355, 8
          %s357 = scalar_lea.vmem %s1, %s356
        $region52: #{tpu_custom_call.1} parent=43 // pred_fallthru
          _
        // Predicated region
        $region53: #{tpu_custom_call.1} parent=43 // pred_check
          %p358 = pneg %p105
        $region54: #{tpu_custom_call.1} parent=43 // pred_check_branch
          %360 = sbr.rel (%p358) target = $region56
        $region55: #{tpu_custom_call.1} parent=43 // pred_region
          %p361 = scmp.lt.s32.totalorder %s29, 2
          %s362 = scalar_select %p361, %s29, 2
          %s363 = smul.addr %s362, 8
          %s364 = scalar_lea.vmem %s2, %s363
        $region56: #{tpu_custom_call.1} parent=43 // pred_fallthru
          _
      $region44: #{tpu_custom_call.1} parent=5 // pred_fallthru
        _
      %p365 = scmp.le.s32.totalorder 1, %s21
      %p366 = scmp.lt.s32.totalorder %s21, 7
      %p367 = pnand %p365, %p366
      %p368 = pneg %p367
      // Predicated region
      $region57: #{tpu_custom_call.1} parent=5 // pred_check
        _
      $region58: #{tpu_custom_call.1} parent=5 // pred_check_branch
        %370 = sbr.rel (%p367) target = $region60
      $region59: #{tpu_custom_call.1} parent=5 // pred_region
        %s371 = ssub.s32 %s21, 1
        // Predicated region
        $region61: #{tpu_custom_call.1} parent=59 // pred_check
          %p372 = pneg %p153
        $region62: #{tpu_custom_call.1} parent=59 // pred_check_branch
          %374 = sbr.rel (%p372) target = $region64
        $region63: #{tpu_custom_call.1} parent=59 // pred_region
          %375 = dma.done [#allocation5], 2048
        $region64: #{tpu_custom_call.1} parent=59 // pred_fallthru
          _
        // Predicated region
        $region65: #{tpu_custom_call.1} parent=59 // pred_check
          %p376 = pneg %p195
        $region66: #{tpu_custom_call.1} parent=59 // pred_check_branch
          %378 = sbr.rel (%p376) target = $region68
        $region67: #{tpu_custom_call.1} parent=59 // pred_region
          %379 = dma.done [#allocation8], 3072
        $region68: #{tpu_custom_call.1} parent=59 // pred_fallthru
          _
        %p380 = scmp.lt.s32.totalorder %s31, 2
        %s381 = scalar_select %p380, %s31, 2
        %s382 = smul.addr %s381, 8
        %s383 = scalar_lea.vmem %s0, %s382
        %p384 = pneg %p59
        %p385 = pneg %p56
        %p386 = scmp.lt.s32.totalorder %s31, 2
        %s387 = scalar_select %p386, %s31, 2
        %s388 = smul.addr %s387, 8
        %s389 = scalar_lea.vmem %s1, %s388
        %p390 = pneg %p85
        %p391 = pneg %p82
        %p392 = scmp.lt.s32.totalorder %s31, 2
        %s393 = scalar_select %p392, %s31, 2
        %s394 = smul.addr %s393, 8
        %s395 = scalar_lea.vmem %s2, %s394
        %p396 = pneg %p111
        %p397 = pneg %p108
        %p398 = pneg %p132
        %p399 = pneg %p129
        %p400 = pneg %p153
        %p401 = pneg %p150
        %p402 = pneg %p174
        %p403 = pneg %p171
        %p404 = pneg %p195
        %p405 = pneg %p192
        %p406 = pneg %p216
        %p407 = pneg %p213
        %p408 = pneg %p237
        %p409 = pneg %p234
        %p410 = pneg %p258
        %p411 = pneg %p255
        %p412 = pneg %p284
        %p413 = pneg %p281
        %s414 = sand.u32 %s271, 1
        %s415 = scalar_lea.sflag [#allocation6], %s414
        %s416 = sand.u32 %s271, 1
        %s417 = smul.addr %s416, 8
        %s418 = scalar_lea.vmem [#allocation9], %s417
        %p419 = scmp.lt.s32.totalorder %s31, 2
        %s420 = scalar_select %p419, %s31, 2
        %s421 = smul.addr %s420, 8
        %s422 = scalar_lea.vmem %s0, %s421
        %p423 = scmp.lt.s32.totalorder %s31, 2
        %s424 = scalar_select %p423, %s31, 2
        %s425 = smul.addr %s424, 8
        %s426 = scalar_lea.vmem %s1, %s425
        %p427 = scmp.lt.s32.totalorder %s31, 2
        %s428 = scalar_select %p427, %s31, 2
        %s429 = smul.addr %s428, 8
        %s430 = scalar_lea.vmem %s2, %s429
        %p432 = scmp.eq.s32.totalorder %s31, 0
        // Predicated region
        $region69: #{tpu_custom_call.1} parent=59 // pred_check
          %p433 = pneg %p432
        $region70: #{tpu_custom_call.1} parent=59 // pred_check_branch
          %435 = sbr.rel (%p433) target = $region72
        $region71: #{tpu_custom_call.1} parent=59 // pred_region
          %v436 = vld [vmem:[%s3] sm:$0xff]
          %v437 = vld [vmem:[%s3 + $0x8] sm:$0xff]
          %v438 = vld [vmem:[#allocation4] sm:$0xff]
          %v439 = vld [vmem:[#allocation4 + $0x8] sm:$0xff]
          %v440 = vld [vmem:[#allocation4 + $0x10] sm:$0xff]
          %v441 = vld [vmem:[#allocation4 + $0x18] sm:$0xff]
          %v442 = vld [vmem:[#allocation4 + $0x20] sm:$0xff]
          %v443 = vld [vmem:[#allocation4 + $0x28] sm:$0xff]
          %v444 = vld [vmem:[#allocation4 + $0x30] sm:$0xff]
          %v445 = vld [vmem:[#allocation4 + $0x38] sm:$0xff]
          %v446 = vld [vmem:[#allocation4 + $0x40] sm:$0xff]
          %v447 = vld [vmem:[#allocation4 + $0x48] sm:$0xff]
          %v448 = vld [vmem:[#allocation4 + $0x50] sm:$0xff]
          %v449 = vld [vmem:[#allocation4 + $0x58] sm:$0xff]
          %v450 = vld [vmem:[#allocation4 + $0x60] sm:$0xff]
          %v451 = vld [vmem:[#allocation4 + $0x68] sm:$0xff]
          %v452 = vld [vmem:[#allocation4 + $0x70] sm:$0xff]
          %v453 = vld [vmem:[#allocation4 + $0x78] sm:$0xff]
          %v454 = vld [vmem:[%s5] sm:$0x1]
          %v456 = vlaneseq
          %v457 = vshrl.u32 %v456, 7
          %v458 = vsub.s32 0, %v457
          %v459 = vrot.slane %v454, %v458
          %461 = vmatprep.subr.mxu0 0.0
          %462 = vmatpush1.msra.mxu0 %v438
          %463 = vmatprep.subr.mxu0 0.0
          %464 = vmatpush1.msra.mxu0 %v439
          %465 = vmatprep.subr.mxu0 0.0
          %466 = vmatpush1.msra.mxu0 %v440
          %467 = vmatprep.subr.mxu0 0.0
          %468 = vmatpush1.msra.mxu0 %v441
          %469 = vmatprep.subr.mxu0 0.0
          %470 = vmatpush1.msra.mxu0 %v442
          %471 = vmatprep.subr.mxu0 0.0
          %472 = vmatpush1.msra.mxu0 %v443
          %473 = vmatprep.subr.mxu0 0.0
          %474 = vmatpush1.msra.mxu0 %v444
          %475 = vmatprep.subr.mxu0 0.0
          %476 = vmatpush1.msra.mxu0 %v445
          %477 = vmatprep.subr.mxu0 0.0
          %478 = vmatpush1.msra.mxu0 %v446
          %479 = vmatprep.subr.mxu0 0.0
          %480 = vmatpush1.msra.mxu0 %v447
          %481 = vmatprep.subr.mxu0 0.0
          %482 = vmatpush1.msra.mxu0 %v448
          %483 = vmatprep.subr.mxu0 0.0
          %484 = vmatpush1.msra.mxu0 %v449
          %485 = vmatprep.subr.mxu0 0.0
          %486 = vmatpush1.msra.mxu0 %v450
          %487 = vmatprep.subr.mxu0 0.0
          %488 = vmatpush1.msra.mxu0 %v451
          %489 = vmatprep.subr.mxu0 0.0
          %490 = vmatpush1.msra.mxu0 %v452
          %491 = vmatprep.subr.mxu0 0.0
          %492 = vmatpush1.msra.mxu0 %v453
          %493 = vmatprep.subr.mxu0 0.0
          %494 = vmatpush1.msra.mxu0 0.0
          %495 = vmatprep.subr.mxu0 0.0
          %496 = vmatpush1.msra.mxu0 0.0
          %497 = vmatprep.subr.mxu0 0.0
          %498 = vmatpush1.msra.mxu0 0.0
          %499 = vmatprep.subr.mxu0 0.0
          %500 = vmatpush1.msra.mxu0 0.0
          %501 = vmatprep.subr.mxu0 0.0
          %502 = vmatpush1.msra.mxu0 0.0
          %503 = vmatprep.subr.mxu0 0.0
          %504 = vmatpush1.msra.mxu0 0.0
          %505 = vmatprep.subr.mxu0 0.0
          %506 = vmatpush1.msra.mxu0 0.0
          %507 = vmatprep.subr.mxu0 0.0
          %508 = vmatpush1.msra.mxu0 0.0
          %509 = vmatprep.subr.mxu0 0.0
          %510 = vmatpush1.msra.mxu0 0.0
          %511 = vmatprep.subr.mxu0 0.0
          %512 = vmatpush1.msra.mxu0 0.0
          %513 = vmatprep.subr.mxu0 0.0
          %514 = vmatpush1.msra.mxu0 0.0
          %515 = vmatprep.subr.mxu0 0.0
          %516 = vmatpush1.msra.mxu0 0.0
          %517 = vmatprep.subr.mxu0 0.0
          %518 = vmatpush1.msra.mxu0 0.0
          %519 = vmatprep.subr.mxu0 0.0
          %520 = vmatpush1.msra.mxu0 0.0
          %521 = vmatprep.subr.mxu0 0.0
          %522 = vmatpush1.msra.mxu0 0.0
          %523 = vmatprep.subr.mxu0 0.0
          %524 = vmatpush1.msra.mxu0 0.0
          %525 = vmatprep.mubr.f32.mxu0 0.0
          %526 = vmatmul.mubr.f32.gmra.mrb[0].mxu0 %v436
          %v527 = vpop.f32.mrb[0].mxu0
          %v528 = vadd.f32 %v459, %v527
          %v529 = vpop.f32.mrb[0].mxu0
          %530 = vmatprep.mubr.f32.mxu0 0.0
          %531 = vmatmul.mubr.f32.gmra.mrb[0].mxu0 %v437
          %v532 = vpop.f32.mrb[0].mxu0
          %v533 = vadd.f32 %v459, %v532
          %v534 = vpop.f32.mrb[0].mxu0
          %535 = vdwg.mxu0
          %v536 = vpack.c.bf16 %v533, %v528
          %537 = vst [vmem:[#allocation2] sm:$0xff] %v536
          %538 = vst [vmem:[#allocation3] sm:$0xff] 0.0
        $region72: #{tpu_custom_call.1} parent=59 // pred_fallthru
          _
        %v539 = vld [vmem:[%s422] sm:$0xff]
        %v540 = vmul.f32 %v539, 0.62831855
        %v541 = vand.u32 2147483647, %v540
        %vm542 = vcmp.le.f32.partialorder %v541, 0.7853982
        %vm543 = vcmp.lt.s32.totalorder %v540, 0
        %v544 = vand.u32 %v540, 2139095040
        %v545 = vshrl.u32 %v544, 23
        %v546 = vsub.s32 %v545, 127
        %v547 = vand.u32 2147483647, %v540
        %v548 = vand.u32 %v547, 8388607
        %v549 = vor.u32 %v548, 8388608
        %v550 = vsub.s32 0, %v549
        %v551 = vadd.s32 %v546, 1
        %vm552 = vcmp.gt.s32.totalorder %v551, 0
        %v553 = vsel %vm552, %v551, 0
        %v554 = vshrl.u32 %v553, 5
        %v555 = vand.u32 %v553, 31
        %v556 = vsub.s32 32, %v555
        %v557 = vshrl.u32 683565275, %v556
        %v558 = vshll.u32 683565275, %v555
        %v559 = vshrl.u32 2475754826, %v556
        %v560 = vor.u32 %v558, %v559
        %v561 = vshll.u32 2475754826, %v555
        %v562 = vshrl.u32 2131351028, %v556
        %v563 = vor.u32 %v561, %v562
        %v564 = vshll.u32 2131351028, %v555
        %v565 = vshrl.u32 2102212464, %v556
        %v566 = vor.u32 %v564, %v565
        %v567 = vshll.u32 2102212464, %v555
        %v568 = vshrl.u32 920167782, %v556
        %v569 = vor.u32 %v567, %v568
        %v570 = vshll.u32 920167782, %v555
        %v571 = vshrl.u32 1326507024, %v556
        %v572 = vor.u32 %v570, %v571
        %vm573 = vcmp.lt.s32.totalorder %v554, 1
        %vm574 = vcmp.lt.s32.totalorder %v554, 2
        %vm575 = vcmp.lt.s32.totalorder %v554, 3
        %vm576 = vcmp.lt.s32.totalorder %v554, 4
        %v577 = vsel %vm573, %v557, %v560
        %v578 = vsel %vm576, %v566, 2102212464
        %v579 = vsel %vm575, %v563, %v578
        %v580 = vsel %vm574, %v577, %v579
        %v581 = vsel %vm573, %v560, %v563
        %v582 = vsel %vm576, %v569, 920167782
        %v583 = vsel %vm575, %v566, %v582
        %v584 = vsel %vm574, %v581, %v583
        %v585 = vsel %vm573, %v563, %v566
        %v586 = vsel %vm576, %v572, 1326507024
        %v587 = vsel %vm575, %v569, %v586
        %v588 = vsel %vm574, %v585, %v587
        %v589 = vshll.u32 %v549, 8
        %v590 = vmul.u32.u64.compose %v589, %v588
        %v591 = vextract.low.u32 %v590
        %v592 = vextract.high.u32 %v590
        %v593 = vmul.u32.u64.compose %v589, %v584
        %v594 = vextract.low.u32 %v593
        %v595 = vextract.high.u32 %v593
        %v596 = vmul.u32 %v589, %v580
        %v597 = vadd.s32 %v592, %v594
        %vm598 = vc.u32 %v592, %v594
        %v599 = vadd.s32 %v595, 1
        %v600 = vsel %vm598, %v599, %v595
        %v601 = vadd.s32 %v596, %v600
        %v602 = vadd.s32 %v601, 536870912
        %v603 = vshrl.u32 %v602, 30
        %v604 = vshll.u32 %v603, 30
        %v605 = vsub.s32 %v601, %v604
        %vm606 = vcmp.lt.s32.totalorder %v605, 0
        %v607 = vsub.s32 0, %v605
        %v608 = vsel %vm606, %v607, %v605
        %v609 = vclz %v608
        %v610 = vsub.s32 %v609, 2
        %vm611 = vcmp.gt.s32.totalorder 0, %v610
        %v612 = vsel %vm611, 0, %v610
        %v613 = vsub.s32 32, %v612
        %v614 = vshll.u32 %v605, %v612
        %v615 = vshrl.u32 %v597, %v613
        %v616 = vor.u32 %v614, %v615
        %v617 = vsub.s32 4294967266, %v612
        %v618 = vadd.s32 %v617, 127
        %v619 = vshll.u32 %v618, 23
        %v620 = vor.u32 4788187, %v619
        %v621 = vand.u32 2147483647, %v620
        %v623 = vcvt.s32.f32 %v616
        %v624 = vmul.f32 %v623, %v621
        %v625 = vxor.u32 %v624, 2147483648
        %v626 = vsel %vm543, %v625, %v624
        %v627 = vsub.s32 4, %v603
        %v628 = vsel %vm543, %v627, %v603
        %v629 = vsel %vm542, %v540, %v626
        %v630 = vsel %vm542, 0, %v628
        %v631 = vcosq.f32.pop %v629
        %v632 = vsinq.f32.pop %v629
        %vm633 = vweird.f32 %v540
        %v634 = vand.u32 %v630, 3
        %vm635 = vcmp.lt.s32.totalorder %v634, 2
        %vm636 = vcmp.eq.s32.totalorder %v634, 0
        %v637 = vxor.u32 %v632, 2147483648
        %v638 = vsel %vm636, %v631, %v637
        %vm639 = vcmp.eq.s32.totalorder %v634, 2
        %v640 = vxor.u32 %v631, 2147483648
        %v641 = vsel %vm639, %v640, %v632
        %v642 = vsel %vm635, %v638, %v641
        %v643 = vsel %vm633, nan, %v642
        %v644 = vadd.f32 %v643, 1.0
        %v645 = vmul.f32 %v644, 0.5
        %vm646 = vcmp.lt.f32.partialorder %v539, 5.0
        %v647 = vsel %vm646, 1, 0
        %v648 = vcvt.s32.f32 %v647
        %v649 = vmul.f32 %v645, %v648
        %v650 = vlaneseq
        %v651 = vand.u32 %v650, 127
        %v652 = vadd.s32 %v651, 128
        %v653 = vadd.s32 %v651, 256
        %v654 = vcvt.s32.f32 %v651
        %v655 = vcvt.s32.f32 %v652
        %v656 = vcvt.s32.f32 %v653
        %v657 = vmul.f32 %v654, 0.1
        %v658 = vmul.f32 %v655, 0.1
        %v659 = vmul.f32 %v656, 0.1
        %661 = vset.pattern.permute.xlu0 0
        %662 = vperm.xlu0 %661, %v539
        %v663 = vpop.permute.xlu0 %662
        %v665 = vsub.f32 %v663, %v657
        %v666 = vsub.f32 %v663, %v658
        %v667 = vsub.f32 %v663, %v659
        %v668 = vmul.f32 %v665, %v665
        %v669 = vmul.f32 %v666, %v666
        %v670 = vmul.f32 %v667, %v667
        %v671 = vmul.f32 %v668, -10.0
        %v672 = vmul.f32 %v669, -10.0
        %v673 = vmul.f32 %v670, -10.0
        %v674 = vmul.f32 %v671, 1.442695
        %v675 = vpow.pop %v674
        %v676 = vmul.f32 %v672, 1.442695
        %v677 = vpow.pop %v676
        %v678 = vmul.f32 %v673, 1.442695
        %v679 = vpow.pop %v678
        %v680 = vpack.c.bf16 %v675, %v675
        %v681 = vpack.c.bf16 %v677, %v677
        %v682 = vpack.c.bf16 %v679, %v679
        %v683 = vld [vmem:[#allocation7] sm:$0xf]
        %v684 = vld [vmem:[#allocation7 + $0x4] sm:$0xf]
        %v685 = vld [vmem:[#allocation7 + $0x8] sm:$0xf]
        %v686 = vld [vmem:[#allocation7 + $0xc] sm:$0xf]
        %v687 = vld [vmem:[#allocation7 + $0x10] sm:$0xf]
        %v688 = vld [vmem:[#allocation7 + $0x14] sm:$0xf]
        %v689 = vld [vmem:[#allocation7 + $0x18] sm:$0xf]
        %v690 = vld [vmem:[#allocation7 + $0x1c] sm:$0xf]
        %v691 = vld [vmem:[#allocation7 + $0x20] sm:$0xf]
        %v692 = vld [vmem:[#allocation7 + $0x24] sm:$0xf]
        %v693 = vld [vmem:[#allocation7 + $0x28] sm:$0xf]
        %v694 = vld [vmem:[#allocation7 + $0x2c] sm:$0xf]
        %v695 = vld [vmem:[#allocation7 + $0x30] sm:$0xf]
        %v696 = vld [vmem:[#allocation7 + $0x34] sm:$0xf]
        %v697 = vld [vmem:[#allocation7 + $0x38] sm:$0xf]
        %v698 = vld [vmem:[#allocation7 + $0x3c] sm:$0xf]
        %v699 = vld [vmem:[#allocation7 + $0x40] sm:$0xf]
        %v700 = vld [vmem:[#allocation7 + $0x44] sm:$0xf]
        %v701 = vld [vmem:[#allocation7 + $0x48] sm:$0xf]
        %v702 = vld [vmem:[#allocation7 + $0x4c] sm:$0xf]
        %v703 = vld [vmem:[#allocation7 + $0x50] sm:$0xf]
        %v704 = vld [vmem:[#allocation7 + $0x54] sm:$0xf]
        %v705 = vld [vmem:[#allocation7 + $0x58] sm:$0xf]
        %v706 = vld [vmem:[#allocation7 + $0x5c] sm:$0xf]
        %v707 = vld [vmem:[#allocation7 + $0x60] sm:$0xf]
        %v708 = vld [vmem:[#allocation7 + $0x64] sm:$0xf]
        %v709 = vld [vmem:[#allocation7 + $0x68] sm:$0xf]
        %v710 = vld [vmem:[#allocation7 + $0x6c] sm:$0xf]
        %v711 = vld [vmem:[#allocation7 + $0x70] sm:$0xf]
        %v712 = vld [vmem:[#allocation7 + $0x74] sm:$0xf]
        %v713 = vld [vmem:[#allocation7 + $0x78] sm:$0xf]
        %v714 = vld [vmem:[#allocation7 + $0x7c] sm:$0xf]
        %v715 = vld [vmem:[#allocation7 + $0x80] sm:$0xf]
        %v716 = vld [vmem:[#allocation7 + $0x84] sm:$0xf]
        %v717 = vld [vmem:[#allocation7 + $0x88] sm:$0xf]
        %v718 = vld [vmem:[#allocation7 + $0x8c] sm:$0xf]
        %v719 = vld [vmem:[#allocation7 + $0x90] sm:$0xf]
        %v720 = vld [vmem:[#allocation7 + $0x94] sm:$0xf]
        %v721 = vld [vmem:[#allocation7 + $0x98] sm:$0xf]
        %v722 = vld [vmem:[#allocation7 + $0x9c] sm:$0xf]
        %v723 = vld [vmem:[#allocation7 + $0xa0] sm:$0xf]
        %v724 = vld [vmem:[#allocation7 + $0xa4] sm:$0xf]
        %v725 = vld [vmem:[#allocation7 + $0xa8] sm:$0xf]
        %v726 = vld [vmem:[#allocation7 + $0xac] sm:$0xf]
        %v727 = vld [vmem:[#allocation7 + $0xb0] sm:$0xf]
        %v728 = vld [vmem:[#allocation7 + $0xb4] sm:$0xf]
        %v729 = vld [vmem:[#allocation7 + $0xb8] sm:$0xf]
        %v730 = vld [vmem:[#allocation7 + $0xbc] sm:$0xf]
        %v731 = vld [vmem:[%s7] sm:$0x1]
        %v733 = vlaneseq
        %v734 = vshrl.u32 %v733, 7
        %v735 = vsub.s32 0, %v734
        %v736 = vrot.slane %v731, %v735
        %v786 = vunpack.c.l.b16 %v683
        %v787 = vunpack.c.l.b16 %v684
        %v788 = vunpack.c.l.b16 %v685
        %v789 = vunpack.c.l.b16 %v686
        %v790 = vunpack.c.l.b16 %v687
        %v791 = vunpack.c.l.b16 %v688
        %v792 = vunpack.c.l.b16 %v689
        %v793 = vunpack.c.l.b16 %v690
        %v794 = vunpack.c.l.b16 %v691
        %v795 = vunpack.c.l.b16 %v692
        %v796 = vunpack.c.l.b16 %v693
        %v797 = vunpack.c.l.b16 %v694
        %v798 = vunpack.c.l.b16 %v695
        %v799 = vunpack.c.l.b16 %v696
        %v800 = vunpack.c.l.b16 %v697
        %v801 = vunpack.c.l.b16 %v698
        %v802 = vunpack.c.l.b16 %v699
        %v803 = vunpack.c.l.b16 %v700
        %v804 = vunpack.c.l.b16 %v701
        %v805 = vunpack.c.l.b16 %v702
        %v806 = vunpack.c.l.b16 %v703
        %v807 = vunpack.c.l.b16 %v704
        %v808 = vunpack.c.l.b16 %v705
        %v809 = vunpack.c.l.b16 %v706
        %v810 = vunpack.c.l.b16 %v707
        %v811 = vunpack.c.l.b16 %v708
        %v812 = vunpack.c.l.b16 %v709
        %v813 = vunpack.c.l.b16 %v710
        %v814 = vunpack.c.l.b16 %v711
        %v815 = vunpack.c.l.b16 %v712
        %v816 = vunpack.c.l.b16 %v713
        %v817 = vunpack.c.l.b16 %v714
        %v818 = vunpack.c.l.b16 %v715
        %v819 = vunpack.c.l.b16 %v716
        %v820 = vunpack.c.l.b16 %v717
        %v821 = vunpack.c.l.b16 %v718
        %v822 = vunpack.c.l.b16 %v719
        %v823 = vunpack.c.l.b16 %v720
        %v824 = vunpack.c.l.b16 %v721
        %v825 = vunpack.c.l.b16 %v722
        %v826 = vunpack.c.l.b16 %v723
        %v827 = vunpack.c.l.b16 %v724
        %v828 = vunpack.c.l.b16 %v725
        %v829 = vunpack.c.l.b16 %v726
        %v830 = vunpack.c.l.b16 %v727
        %v831 = vunpack.c.l.b16 %v728
        %v832 = vunpack.c.l.b16 %v729
        %v833 = vunpack.c.l.b16 %v730
        %v834 = vpack.c.b16 %v787, %v786
        %v835 = vpack.c.b16 %v789, %v788
        %v836 = vpack.c.b16 %v791, %v790
        %v837 = vpack.c.b16 %v793, %v792
        %v838 = vpack.c.b16 %v795, %v794
        %v839 = vpack.c.b16 %v797, %v796
        %v840 = vpack.c.b16 %v799, %v798
        %v841 = vpack.c.b16 %v801, %v800
        %v842 = vpack.c.b16 %v803, %v802
        %v843 = vpack.c.b16 %v805, %v804
        %v844 = vpack.c.b16 %v807, %v806
        %v845 = vpack.c.b16 %v809, %v808
        %v846 = vpack.c.b16 %v811, %v810
        %v847 = vpack.c.b16 %v813, %v812
        %v848 = vpack.c.b16 %v815, %v814
        %v849 = vpack.c.b16 %v817, %v816
        %v850 = vpack.c.b16 %v819, %v818
        %v851 = vpack.c.b16 %v821, %v820
        %v852 = vpack.c.b16 %v823, %v822
        %v853 = vpack.c.b16 %v825, %v824
        %v854 = vpack.c.b16 %v827, %v826
        %v855 = vpack.c.b16 %v829, %v828
        %v856 = vpack.c.b16 %v831, %v830
        %v857 = vpack.c.b16 %v833, %v832
        %882 = vmatprep.subr.bf16.mxu0 0
        %883 = vmatpush1.bf16.msra.mxu0 %v834
        %884 = vmatprep.subr.bf16.mxu0 0
        %885 = vmatpush1.bf16.msra.mxu0 %v835
        %886 = vmatprep.subr.bf16.mxu0 0
        %887 = vmatpush1.bf16.msra.mxu0 %v836
        %888 = vmatprep.subr.bf16.mxu0 0
        %889 = vmatpush1.bf16.msra.mxu0 %v837
        %890 = vmatprep.subr.bf16.mxu0 0
        %891 = vmatpush1.bf16.msra.mxu0 %v838
        %892 = vmatprep.subr.bf16.mxu0 0
        %893 = vmatpush1.bf16.msra.mxu0 %v839
        %894 = vmatprep.subr.bf16.mxu0 0
        %895 = vmatpush1.bf16.msra.mxu0 %v840
        %896 = vmatprep.subr.bf16.mxu0 0
        %897 = vmatpush1.bf16.msra.mxu0 %v841
        %898 = vmatprep.subr.bf16.mxu0 0
        %899 = vmatpush1.bf16.msra.mxu0 %v842
        %900 = vmatprep.subr.bf16.mxu0 0
        %901 = vmatpush1.bf16.msra.mxu0 %v843
        %902 = vmatprep.subr.bf16.mxu0 0
        %903 = vmatpush1.bf16.msra.mxu0 %v844
        %904 = vmatprep.subr.bf16.mxu0 0
        %905 = vmatpush1.bf16.msra.mxu0 %v845
        %906 = vmatprep.subr.bf16.mxu0 0
        %907 = vmatpush1.bf16.msra.mxu0 %v846
        %908 = vmatprep.subr.bf16.mxu0 0
        %909 = vmatpush1.bf16.msra.mxu0 %v847
        %910 = vmatprep.subr.bf16.mxu0 0
        %911 = vmatpush1.bf16.msra.mxu0 %v848
        %912 = vmatprep.subr.bf16.mxu0 0
        %913 = vmatpush1.bf16.msra.mxu0 %v849
        %914 = vmatprep.mubr.bf16.mxu0 %v681
        %915 = vmatmul.mubr.bf16.gmra.mrb[0].mxu0 %v680
        %v916 = vpop.f32.mrb[0].mxu0
        %v917 = vadd.f32 %v736, %v916
        %v918 = vpop.f32.mrb[0].mxu0
        %v919 = vpop.f32.mrb[0].mxu0
        %v920 = vpop.f32.mrb[0].mxu0
        %921 = vdwg.mxu0
        %922 = vmatprep.subr.bf16.mxu0 0
        %923 = vmatpush1.bf16.msra.mxu0 %v850
        %924 = vmatprep.subr.bf16.mxu0 0
        %925 = vmatpush1.bf16.msra.mxu0 %v851
        %926 = vmatprep.subr.bf16.mxu0 0
        %927 = vmatpush1.bf16.msra.mxu0 %v852
        %928 = vmatprep.subr.bf16.mxu0 0
        %929 = vmatpush1.bf16.msra.mxu0 %v853
        %930 = vmatprep.subr.bf16.mxu0 0
        %931 = vmatpush1.bf16.msra.mxu0 %v854
        %932 = vmatprep.subr.bf16.mxu0 0
        %933 = vmatpush1.bf16.msra.mxu0 %v855
        %934 = vmatprep.subr.bf16.mxu0 0
        %935 = vmatpush1.bf16.msra.mxu0 %v856
        %936 = vmatprep.subr.bf16.mxu0 0
        %937 = vmatpush1.bf16.msra.mxu0 %v857
        %938 = vmatprep.subr.bf16.mxu0 0
        %939 = vmatpush1.bf16.msra.mxu0 0
        %940 = vmatprep.subr.bf16.mxu0 0
        %941 = vmatpush1.bf16.msra.mxu0 0
        %942 = vmatprep.subr.bf16.mxu0 0
        %943 = vmatpush1.bf16.msra.mxu0 0
        %944 = vmatprep.subr.bf16.mxu0 0
        %945 = vmatpush1.bf16.msra.mxu0 0
        %946 = vmatprep.subr.bf16.mxu0 0
        %947 = vmatpush1.bf16.msra.mxu0 0
        %948 = vmatprep.subr.bf16.mxu0 0
        %949 = vmatpush1.bf16.msra.mxu0 0
        %950 = vmatprep.subr.bf16.mxu0 0
        %951 = vmatpush1.bf16.msra.mxu0 0
        %952 = vmatprep.subr.bf16.mxu0 0
        %953 = vmatpush1.bf16.msra.mxu0 0
        %954 = vmatprep.mubr.bf16.mxu0 0
        %955 = vmatmul.mubr.bf16.gmra.mrb[0].mxu0 %v682
        %v956 = vpop.f32.mrb[0].mxu0
        %v957 = vadd.f32 %v917, %v956
        %v958 = vpop.f32.mrb[0].mxu0
        %v959 = vpop.f32.mrb[0].mxu0
        %v960 = vpop.f32.mrb[0].mxu0
        %961 = vdwg.mxu0
        %v962 = vtanh.pop %v957
        %v963 = vpack.c.bf16 %v962, %v962
        %v964 = vld [vmem:[%s8] sm:$0xf]
        %v965 = vld [vmem:[%s8 + $0x4] sm:$0xf]
        %v966 = vld [vmem:[%s8 + $0x8] sm:$0xf]
        %v967 = vld [vmem:[%s8 + $0xc] sm:$0xf]
        %v968 = vld [vmem:[%s8 + $0x10] sm:$0xf]
        %v969 = vld [vmem:[%s8 + $0x14] sm:$0xf]
        %v970 = vld [vmem:[%s8 + $0x18] sm:$0xf]
        %v971 = vld [vmem:[%s8 + $0x1c] sm:$0xf]
        %v972 = vld [vmem:[%s8 + $0x20] sm:$0xf]
        %v973 = vld [vmem:[%s8 + $0x24] sm:$0xf]
        %v974 = vld [vmem:[%s8 + $0x28] sm:$0xf]
        %v975 = vld [vmem:[%s8 + $0x2c] sm:$0xf]
        %v976 = vld [vmem:[%s8 + $0x30] sm:$0xf]
        %v977 = vld [vmem:[%s8 + $0x34] sm:$0xf]
        %v978 = vld [vmem:[%s8 + $0x38] sm:$0xf]
        %v979 = vld [vmem:[%s8 + $0x3c] sm:$0xf]
        %v980 = vld [vmem:[%s9] sm:$0x1]
        %v982 = vlaneseq
        %v983 = vshrl.u32 %v982, 7
        %v984 = vsub.s32 0, %v983
        %v985 = vrot.slane %v980, %v984
        %v1003 = vunpack.c.l.b16 %v964
        %v1004 = vunpack.c.l.b16 %v965
        %v1005 = vunpack.c.l.b16 %v966
        %v1006 = vunpack.c.l.b16 %v967
        %v1007 = vunpack.c.l.b16 %v968
        %v1008 = vunpack.c.l.b16 %v969
        %v1009 = vunpack.c.l.b16 %v970
        %v1010 = vunpack.c.l.b16 %v971
        %v1011 = vunpack.c.l.b16 %v972
        %v1012 = vunpack.c.l.b16 %v973
        %v1013 = vunpack.c.l.b16 %v974
        %v1014 = vunpack.c.l.b16 %v975
        %v1015 = vunpack.c.l.b16 %v976
        %v1016 = vunpack.c.l.b16 %v977
        %v1017 = vunpack.c.l.b16 %v978
        %v1018 = vunpack.c.l.b16 %v979
        %v1019 = vpack.c.b16 %v1004, %v1003
        %v1020 = vpack.c.b16 %v1006, %v1005
        %v1021 = vpack.c.b16 %v1008, %v1007
        %v1022 = vpack.c.b16 %v1010, %v1009
        %v1023 = vpack.c.b16 %v1012, %v1011
        %v1024 = vpack.c.b16 %v1014, %v1013
        %v1025 = vpack.c.b16 %v1016, %v1015
        %v1026 = vpack.c.b16 %v1018, %v1017
        %1035 = vmatprep.subr.bf16.mxu0 0
        %1036 = vmatpush1.bf16.msra.mxu0 %v1019
        %1037 = vmatprep.subr.bf16.mxu0 0
        %1038 = vmatpush1.bf16.msra.mxu0 %v1020
        %1039 = vmatprep.subr.bf16.mxu0 0
        %1040 = vmatpush1.bf16.msra.mxu0 %v1021
        %1041 = vmatprep.subr.bf16.mxu0 0
        %1042 = vmatpush1.bf16.msra.mxu0 %v1022
        %1043 = vmatprep.subr.bf16.mxu0 0
        %1044 = vmatpush1.bf16.msra.mxu0 %v1023
        %1045 = vmatprep.subr.bf16.mxu0 0
        %1046 = vmatpush1.bf16.msra.mxu0 %v1024
        %1047 = vmatprep.subr.bf16.mxu0 0
        %1048 = vmatpush1.bf16.msra.mxu0 %v1025
        %1049 = vmatprep.subr.bf16.mxu0 0
        %1050 = vmatpush1.bf16.msra.mxu0 %v1026
        %1051 = vmatprep.subr.bf16.mxu0 0
        %1052 = vmatpush1.bf16.msra.mxu0 0
        %1053 = vmatprep.subr.bf16.mxu0 0
        %1054 = vmatpush1.bf16.msra.mxu0 0
        %1055 = vmatprep.subr.bf16.mxu0 0
        %1056 = vmatpush1.bf16.msra.mxu0 0
        %1057 = vmatprep.subr.bf16.mxu0 0
        %1058 = vmatpush1.bf16.msra.mxu0 0
        %1059 = vmatprep.subr.bf16.mxu0 0
        %1060 = vmatpush1.bf16.msra.mxu0 0
        %1061 = vmatprep.subr.bf16.mxu0 0
        %1062 = vmatpush1.bf16.msra.mxu0 0
        %1063 = vmatprep.subr.bf16.mxu0 0
        %1064 = vmatpush1.bf16.msra.mxu0 0
        %1065 = vmatprep.subr.bf16.mxu0 0
        %1066 = vmatpush1.bf16.msra.mxu0 0
        %1067 = vmatprep.mubr.bf16.mxu0 0
        %1068 = vmatmul.mubr.bf16.gmra.mrb[0].mxu0 %v963
        %v1069 = vpop.f32.mrb[0].mxu0
        %v1070 = vadd.f32 %v985, %v1069
        %v1071 = vpop.f32.mrb[0].mxu0
        %v1072 = vpop.f32.mrb[0].mxu0
        %v1073 = vpop.f32.mrb[0].mxu0
        %1074 = vdwg.mxu0
        %v1075 = vtanh.pop %v1070
        %1077 = vset.pattern.permute.xlu0 0
        %1078 = vperm.xlu0 %1077, %v649
        %v1079 = vpop.permute.xlu0 %1078
        %v1081 = vmul.f32 %v1075, %v1079
        %v1082 = vld [vmem:[%s426] sm:$0xff]
        %v1083 = vld [vmem:[%s430] sm:$0xff]
        %1084 = vset.pattern.permute.xlu0 0
        %1085 = vperm.xlu0 %1084, %v1082
        %v1086 = vpop.permute.xlu0 %1085
        %vm1087 = vcmp.eq.s32.totalorder %v1086, %v651
        %v1088 = vsel %vm1087, 1, 0
        %v1089 = vcvt.s32.f32 %v1088
        %v1090 = vpack.c.bf16 %v1089, %v1089
        %s1091 = smul.u32 %s30, 8
        %v1092 = vstv %s1091
        %v1093 = vadd.s32 %v651, %v1092
        %1094 = vset.pattern.permute.xlu0 0
        %1095 = vperm.xlu0 %1094, %v1083
        %v1096 = vpop.permute.xlu0 %1095
        %vm1097 = vcmp.eq.s32.totalorder %v1096, %v1093
        %v1098 = vsel %vm1097, 1, 0
        %v1099 = vcvt.s32.f32 %v1098
        %v1100 = vpack.c.bf16 %v1099, %v1099
        %v1101 = vld [vmem:[#allocation2] sm:$0xff]
        %vm1102 = vcmask 130048
        %v1104 = vsel %vm1102, %v1090, 0
        %1106 = vmatprep.subr.bf16.mxu0 0
        %1107 = vmatpush1.bf16.msra.mxu0 %v1101
        %1108 = vmatprep.subr.bf16.mxu0 0
        %1109 = vmatpush1.bf16.msra.mxu0 0
        %1110 = vmatprep.subr.bf16.mxu0 0
        %1111 = vmatpush1.bf16.msra.mxu0 0
        %1112 = vmatprep.subr.bf16.mxu0 0
        %1113 = vmatpush1.bf16.msra.mxu0 0
        %1114 = vmatprep.subr.bf16.mxu0 0
        %1115 = vmatpush1.bf16.msra.mxu0 0
        %1116 = vmatprep.subr.bf16.mxu0 0
        %1117 = vmatpush1.bf16.msra.mxu0 0
        %1118 = vmatprep.subr.bf16.mxu0 0
        %1119 = vmatpush1.bf16.msra.mxu0 0
        %1120 = vmatprep.subr.bf16.mxu0 0
        %1121 = vmatpush1.bf16.msra.mxu0 0
        %1122 = vmatprep.subr.bf16.mxu0 0
        %1123 = vmatpush1.bf16.msra.mxu0 0
        %1124 = vmatprep.subr.bf16.mxu0 0
        %1125 = vmatpush1.bf16.msra.mxu0 0
        %1126 = vmatprep.subr.bf16.mxu0 0
        %1127 = vmatpush1.bf16.msra.mxu0 0
        %1128 = vmatprep.subr.bf16.mxu0 0
        %1129 = vmatpush1.bf16.msra.mxu0 0
        %1130 = vmatprep.subr.bf16.mxu0 0
        %1131 = vmatpush1.bf16.msra.mxu0 0
        %1132 = vmatprep.subr.bf16.mxu0 0
        %1133 = vmatpush1.bf16.msra.mxu0 0
        %1134 = vmatprep.subr.bf16.mxu0 0
        %1135 = vmatpush1.bf16.msra.mxu0 0
        %1136 = vmatprep.subr.bf16.mxu0 0
        %1137 = vmatpush1.bf16.msra.mxu0 0
        %1138 = vmatprep.mubr.bf16.mxu0 0
        %1139 = vmatmul.mubr.bf16.gmra.mrb[0].mxu0 %v1104
        %v1140 = vpop.f32.mrb[0].mxu0
        %v1141 = vadd.f32 0.0, %v1140
        %v1142 = vpop.f32.mrb[0].mxu0
        %v1143 = vpop.f32.mrb[0].mxu0
        %v1144 = vpop.f32.mrb[0].mxu0
        %1145 = vdwg.mxu0
        %v1146 = vmul.f32 %v1141, %v1081
        %v1147 = vpack.c.bf16 %v1146, %v1146
        %v1148 = vld [vmem:[#allocation3] sm:$0xff]
        %1149 = vxpose.xlu0.c.b16.start [1/8] %v1100, 128
        %1150 = vxpose.xlu0.c.b16.cont [2/8] 0, 128
        %1151 = vxpose.xlu0.c.b16.cont [3/8] 0, 128
        %1152 = vxpose.xlu0.c.b16.cont [4/8] 0, 128
        %1153 = vxpose.xlu0.c.b16.cont [5/8] 0, 128
        %1154 = vxpose.xlu0.c.b16.cont [6/8] 0, 128
        %1155 = vxpose.xlu0.c.b16.cont [7/8] 0, 128
        %1156 = vxpose.xlu0.c.b16.end [8/8] 0, 128
        %v1157 = vpop.trf.xlu0
        %v1158 = vpop.trf.xlu0
        %v1159 = vpop.trf.xlu0
        %v1160 = vpop.trf.xlu0
        %v1161 = vpop.trf.xlu0
        %v1162 = vpop.trf.xlu0
        %v1163 = vpop.trf.xlu0
        %v1164 = vpop.trf.xlu0
        %vm1165 = vcmask 64512
        %v1167 = vsel %vm1165, %v1157, 0
        %vm1169 = vcmask 1043456
        %v1171 = vsel %vm1169, %v1147, 0
        %1173 = vmatprep.subr.bf16.mxu0 0
        %1174 = vmatpush1.bf16.msra.mxu0 %v1171
        %1175 = vmatprep.subr.bf16.mxu0 0
        %1176 = vmatpush1.bf16.msra.mxu0 0
        %1177 = vmatprep.subr.bf16.mxu0 0
        %1178 = vmatpush1.bf16.msra.mxu0 0
        %1179 = vmatprep.subr.bf16.mxu0 0
        %1180 = vmatpush1.bf16.msra.mxu0 0
        %1181 = vmatprep.subr.bf16.mxu0 0
        %1182 = vmatpush1.bf16.msra.mxu0 0
        %1183 = vmatprep.subr.bf16.mxu0 0
        %1184 = vmatpush1.bf16.msra.mxu0 0
        %1185 = vmatprep.subr.bf16.mxu0 0
        %1186 = vmatpush1.bf16.msra.mxu0 0
        %1187 = vmatprep.subr.bf16.mxu0 0
        %1188 = vmatpush1.bf16.msra.mxu0 0
        %1189 = vmatprep.subr.bf16.mxu0 0
        %1190 = vmatpush1.bf16.msra.mxu0 0
        %1191 = vmatprep.subr.bf16.mxu0 0
        %1192 = vmatpush1.bf16.msra.mxu0 0
        %1193 = vmatprep.subr.bf16.mxu0 0
        %1194 = vmatpush1.bf16.msra.mxu0 0
        %1195 = vmatprep.subr.bf16.mxu0 0
        %1196 = vmatpush1.bf16.msra.mxu0 0
        %1197 = vmatprep.subr.bf16.mxu0 0
        %1198 = vmatpush1.bf16.msra.mxu0 0
        %1199 = vmatprep.subr.bf16.mxu0 0
        %1200 = vmatpush1.bf16.msra.mxu0 0
        %1201 = vmatprep.subr.bf16.mxu0 0
        %1202 = vmatpush1.bf16.msra.mxu0 0
        %1203 = vmatprep.subr.bf16.mxu0 0
        %1204 = vmatpush1.bf16.msra.mxu0 0
        %1205 = vmatprep.mubr.bf16.mxu0 0
        %1206 = vmatmul.mubr.bf16.gmra.mrb[0].mxu0 %v1167
        %v1207 = vpop.f32.mrb[0].mxu0
        %v1208 = vadd.f32 0.0, %v1207
        %v1209 = vpop.f32.mrb[0].mxu0
        %v1210 = vpop.f32.mrb[0].mxu0
        %v1211 = vpop.f32.mrb[0].mxu0
        %1212 = vdwg.mxu0
        %v1213 = vadd.f32 %v1148, %v1208
        %1214 = vst [vmem:[#allocation3] sm:$0xff] %v1213
        %p1215 = scmp.eq.s32.totalorder %s31, 2
        // Predicated region
        $region73: #{tpu_custom_call.1} parent=59 // pred_check
          %p1216 = pneg %p1215
        $region74: #{tpu_custom_call.1} parent=59 // pred_check_branch
          %1218 = sbr.rel (%p1216) target = $region76
        $region75: #{tpu_custom_call.1} parent=59 // pred_region
          %v1219 = vld [vmem:[#allocation4] sm:$0xff]
          %v1220 = vld [vmem:[#allocation4 + $0x8] sm:$0xff]
          %v1221 = vld [vmem:[#allocation4 + $0x10] sm:$0xff]
          %v1222 = vld [vmem:[#allocation4 + $0x18] sm:$0xff]
          %v1223 = vld [vmem:[#allocation4 + $0x20] sm:$0xff]
          %v1224 = vld [vmem:[#allocation4 + $0x28] sm:$0xff]
          %v1225 = vld [vmem:[#allocation4 + $0x30] sm:$0xff]
          %v1226 = vld [vmem:[#allocation4 + $0x38] sm:$0xff]
          %v1227 = vld [vmem:[#allocation4 + $0x40] sm:$0xff]
          %v1228 = vld [vmem:[#allocation4 + $0x48] sm:$0xff]
          %v1229 = vld [vmem:[#allocation4 + $0x50] sm:$0xff]
          %v1230 = vld [vmem:[#allocation4 + $0x58] sm:$0xff]
          %v1231 = vld [vmem:[#allocation4 + $0x60] sm:$0xff]
          %v1232 = vld [vmem:[#allocation4 + $0x68] sm:$0xff]
          %v1233 = vld [vmem:[#allocation4 + $0x70] sm:$0xff]
          %v1234 = vld [vmem:[#allocation4 + $0x78] sm:$0xff]
          %v1235 = vld [vmem:[%s5] sm:$0x1]
          %v1236 = vld [vmem:[#allocation3] sm:$0xff]
          %v1238 = vlaneseq
          %v1239 = vshrl.u32 %v1238, 7
          %v1240 = vsub.s32 0, %v1239
          %v1241 = vrot.slane %v1235, %v1240
          %1243 = vmatprep.subr.mxu0 0.0
          %1244 = vmatpush1.msra.mxu0 %v1219
          %1245 = vmatprep.subr.mxu0 0.0
          %1246 = vmatpush1.msra.mxu0 %v1220
          %1247 = vmatprep.subr.mxu0 0.0
          %1248 = vmatpush1.msra.mxu0 %v1221
          %1249 = vmatprep.subr.mxu0 0.0
          %1250 = vmatpush1.msra.mxu0 %v1222
          %1251 = vmatprep.subr.mxu0 0.0
          %1252 = vmatpush1.msra.mxu0 %v1223
          %1253 = vmatprep.subr.mxu0 0.0
          %1254 = vmatpush1.msra.mxu0 %v1224
          %1255 = vmatprep.subr.mxu0 0.0
          %1256 = vmatpush1.msra.mxu0 %v1225
          %1257 = vmatprep.subr.mxu0 0.0
          %1258 = vmatpush1.msra.mxu0 %v1226
          %1259 = vmatprep.subr.mxu0 0.0
          %1260 = vmatpush1.msra.mxu0 %v1227
          %1261 = vmatprep.subr.mxu0 0.0
          %1262 = vmatpush1.msra.mxu0 %v1228
          %1263 = vmatprep.subr.mxu0 0.0
          %1264 = vmatpush1.msra.mxu0 %v1229
          %1265 = vmatprep.subr.mxu0 0.0
          %1266 = vmatpush1.msra.mxu0 %v1230
          %1267 = vmatprep.subr.mxu0 0.0
          %1268 = vmatpush1.msra.mxu0 %v1231
          %1269 = vmatprep.subr.mxu0 0.0
          %1270 = vmatpush1.msra.mxu0 %v1232
          %1271 = vmatprep.subr.mxu0 0.0
          %1272 = vmatpush1.msra.mxu0 %v1233
          %1273 = vmatprep.subr.mxu0 0.0
          %1274 = vmatpush1.msra.mxu0 %v1234
          %1275 = vmatprep.subr.mxu0 0.0
          %1276 = vmatpush1.msra.mxu0 0.0
          %1277 = vmatprep.subr.mxu0 0.0
          %1278 = vmatpush1.msra.mxu0 0.0
          %1279 = vmatprep.subr.mxu0 0.0
          %1280 = vmatpush1.msra.mxu0 0.0
          %1281 = vmatprep.subr.mxu0 0.0
          %1282 = vmatpush1.msra.mxu0 0.0
          %1283 = vmatprep.subr.mxu0 0.0
          %1284 = vmatpush1.msra.mxu0 0.0
          %1285 = vmatprep.subr.mxu0 0.0
          %1286 = vmatpush1.msra.mxu0 0.0
          %1287 = vmatprep.subr.mxu0 0.0
          %1288 = vmatpush1.msra.mxu0 0.0
          %1289 = vmatprep.subr.mxu0 0.0
          %1290 = vmatpush1.msra.mxu0 0.0
          %1291 = vmatprep.subr.mxu0 0.0
          %1292 = vmatpush1.msra.mxu0 0.0
          %1293 = vmatprep.subr.mxu0 0.0
          %1294 = vmatpush1.msra.mxu0 0.0
          %1295 = vmatprep.subr.mxu0 0.0
          %1296 = vmatpush1.msra.mxu0 0.0
          %1297 = vmatprep.subr.mxu0 0.0
          %1298 = vmatpush1.msra.mxu0 0.0
          %1299 = vmatprep.subr.mxu0 0.0
          %1300 = vmatpush1.msra.mxu0 0.0
          %1301 = vmatprep.subr.mxu0 0.0
          %1302 = vmatpush1.msra.mxu0 0.0
          %1303 = vmatprep.subr.mxu0 0.0
          %1304 = vmatpush1.msra.mxu0 0.0
          %1305 = vmatprep.subr.mxu0 0.0
          %1306 = vmatpush1.msra.mxu0 0.0
          %1307 = vmatprep.mubr.f32.mxu0 0.0
          %1308 = vmatmul.mubr.f32.gmra.mrb[0].mxu0 %v1236
          %v1309 = vpop.f32.mrb[0].mxu0
          %v1310 = vadd.f32 %v1241, %v1309
          %v1311 = vpop.f32.mrb[0].mxu0
          %1312 = vdwg.mxu0
          %v1313 = vtanh.pop %v1310
          %1314 = vmatprep.subr.mxu0 0.0
          %1315 = vmatpush1.msra.mxu0 %v1219
          %1316 = vmatprep.subr.mxu0 0.0
          %1317 = vmatpush1.msra.mxu0 %v1220
          %1318 = vmatprep.subr.mxu0 0.0
          %1319 = vmatpush1.msra.mxu0 %v1221
          %1320 = vmatprep.subr.mxu0 0.0
          %1321 = vmatpush1.msra.mxu0 %v1222
          %1322 = vmatprep.subr.mxu0 0.0
          %1323 = vmatpush1.msra.mxu0 %v1223
          %1324 = vmatprep.subr.mxu0 0.0
          %1325 = vmatpush1.msra.mxu0 %v1224
          %1326 = vmatprep.subr.mxu0 0.0
          %1327 = vmatpush1.msra.mxu0 %v1225
          %1328 = vmatprep.subr.mxu0 0.0
          %1329 = vmatpush1.msra.mxu0 %v1226
          %1330 = vmatprep.subr.mxu0 0.0
          %1331 = vmatpush1.msra.mxu0 %v1227
          %1332 = vmatprep.subr.mxu0 0.0
          %1333 = vmatpush1.msra.mxu0 %v1228
          %1334 = vmatprep.subr.mxu0 0.0
          %1335 = vmatpush1.msra.mxu0 %v1229
          %1336 = vmatprep.subr.mxu0 0.0
          %1337 = vmatpush1.msra.mxu0 %v1230
          %1338 = vmatprep.subr.mxu0 0.0
          %1339 = vmatpush1.msra.mxu0 %v1231
          %1340 = vmatprep.subr.mxu0 0.0
          %1341 = vmatpush1.msra.mxu0 %v1232
          %1342 = vmatprep.subr.mxu0 0.0
          %1343 = vmatpush1.msra.mxu0 %v1233
          %1344 = vmatprep.subr.mxu0 0.0
          %1345 = vmatpush1.msra.mxu0 %v1234
          %1346 = vmatprep.subr.mxu0 0.0
          %1347 = vmatpush1.msra.mxu0 0.0
          %1348 = vmatprep.subr.mxu0 0.0
          %1349 = vmatpush1.msra.mxu0 0.0
          %1350 = vmatprep.subr.mxu0 0.0
          %1351 = vmatpush1.msra.mxu0 0.0
          %1352 = vmatprep.subr.mxu0 0.0
          %1353 = vmatpush1.msra.mxu0 0.0
          %1354 = vmatprep.subr.mxu0 0.0
          %1355 = vmatpush1.msra.mxu0 0.0
          %1356 = vmatprep.subr.mxu0 0.0
          %1357 = vmatpush1.msra.mxu0 0.0
          %1358 = vmatprep.subr.mxu0 0.0
          %1359 = vmatpush1.msra.mxu0 0.0
          %1360 = vmatprep.subr.mxu0 0.0
          %1361 = vmatpush1.msra.mxu0 0.0
          %1362 = vmatprep.subr.mxu0 0.0
          %1363 = vmatpush1.msra.mxu0 0.0
          %1364 = vmatprep.subr.mxu0 0.0
          %1365 = vmatpush1.msra.mxu0 0.0
          %1366 = vmatprep.subr.mxu0 0.0
          %1367 = vmatpush1.msra.mxu0 0.0
          %1368 = vmatprep.subr.mxu0 0.0
          %1369 = vmatpush1.msra.mxu0 0.0
          %1370 = vmatprep.subr.mxu0 0.0
          %1371 = vmatpush1.msra.mxu0 0.0
          %1372 = vmatprep.subr.mxu0 0.0
          %1373 = vmatpush1.msra.mxu0 0.0
          %1374 = vmatprep.subr.mxu0 0.0
          %1375 = vmatpush1.msra.mxu0 0.0
          %1376 = vmatprep.subr.mxu0 0.0
          %1377 = vmatpush1.msra.mxu0 0.0
          %1378 = vmatprep.mubr.f32.mxu0 0.0
          %1379 = vmatmul.mubr.f32.gmra.mrb[0].mxu0 %v1313
          %v1380 = vpop.f32.mrb[0].mxu0
          %v1381 = vadd.f32 %v1241, %v1380
          %v1382 = vpop.f32.mrb[0].mxu0
          %1383 = vdwg.mxu0
          %1384 = vst [vmem:[%s418] sm:$0xff] %v1381
        $region76: #{tpu_custom_call.1} parent=59 // pred_fallthru
          _
        %s1385 = sand.u32 %s271, 1
        %s1386 = scalar_lea.sflag [#allocation6], %s1385
        %s1387 = sand.u32 %s271, 1
        %s1388 = smul.addr %s1387, 8
        %s1389 = scalar_lea.vmem [#allocation9], %s1388
        // Predicated region
        $region77: #{tpu_custom_call.1} parent=59 // pred_check
          %p1390 = pneg %p281
        $region78: #{tpu_custom_call.1} parent=59 // pred_check_branch
          %1392 = sbr.rel (%p1390) target = $region80
        $region79: #{tpu_custom_call.1} parent=59 // pred_region
          %s1394 = ssub.s32 128, 128
          %1395 = vsyncadd %s1386, %s1394
          %s1396 = smul.addr %s30, 128
          %s1397 = scalar_lea.hbm %s10, %s1396
          %s1399 = sshll.u32 %s1389, 4
          %s1400 = int_to_ptr.vmem [resolvable:$true] %s1399
          %1402 = dma.vmem_to_hbm [thread:$0]  %s1400, 128, %s1397, %s1386
        $region80: #{tpu_custom_call.1} parent=59 // pred_fallthru
          _
      $region60: #{tpu_custom_call.1} parent=5 // pred_fallthru
        _
      %p1403 = scmp.le.s32.totalorder 2, %s21
      // Predicated region
      $region81: #{tpu_custom_call.1} parent=5 // pred_check
        %p1404 = pneg %p1403
      $region82: #{tpu_custom_call.1} parent=5 // pred_check_branch
        %1406 = sbr.rel (%p1404) target = $region84
      $region83: #{tpu_custom_call.1} parent=5 // pred_region
        %s1407 = ssub.s32 %s21, 2
        // Predicated region
        $region85: #{tpu_custom_call.1} parent=83 // pred_check
          %p1408 = pneg %p287
        $region86: #{tpu_custom_call.1} parent=83 // pred_check_branch
          %1410 = sbr.rel (%p1408) target = $region88
        $region87: #{tpu_custom_call.1} parent=83 // pred_region
          %s1411 = sand.u32 %s272, 1
          %s1412 = scalar_lea.sflag [#allocation6], %s1411
          %s1413 = sand.u32 %s272, 1
          %s1414 = smul.addr %s1413, 8
          %s1415 = scalar_lea.vmem [#allocation9], %s1414
          %1416 = dma.done %s1412, 128
        $region88: #{tpu_custom_call.1} parent=83 // pred_fallthru
          _
      $region84: #{tpu_custom_call.1} parent=5 // pred_fallthru
        _
    $region6: #{tpu_custom_call.1} parent=1 // loop_footer
      %s25 = sadd.s32 1, %s21
    $region7: #{tpu_custom_call.1} parent=1 // loop_footer_branch
      %20 = sbr.rel target = $region3
    $region8: #{tpu_custom_call.1} parent=1 // loop_exit
      _
    %1417 = vsyncpa [#allocation5], 1
    %s1418 = scalar_lea.sflag [#allocation5], 1
    %1419 = vsyncpa %s1418, 1
    %1420 = vsyncpa [#allocation8], 1
    %1421 = vsyncpa [#allocation6], 1
    %s1422 = scalar_lea.sflag [#allocation6], 1
    %1423 = vsyncpa %s1422, 1

</llo_original>
